<compile_context>
chip_gen: v5e
topology: v5e:2x2
jax: 0.10.0
libtpu: 0.0.40
codegen_flags: <defaults>
</compile_context>

<pallas_src>
import math

import numpy as np
import jax
import jax.numpy as jnp
from jax.experimental import pallas as pl
from jax.experimental.pallas import tpu as pltpu


# ----------------------------- model dimensions -----------------------------
C_IN = 4
C1, C2, C3 = 8, 16, 32
N_MEM = 16
D_MEM = C1 + C2          # pooled-query dim == memory value dim (24)
C_OUT = 4
H_IN = W_IN = 16
H1 = W1 = 16             # f1 spatial
H2 = W2 = 8              # f2 spatial
H3 = W3 = 8              # f3 / embedding / output spatial
_SCALE = 1.0 / math.sqrt(float(D_MEM))


# ----------------------------- fused Pallas kernel -----------------------------

def _fused_forward_kernel(xz_ref,
                          w1_ref, b1_ref,
                          w2_ref, b2_ref,
                          w3_ref, b3_ref,
                          wi_ref, bi_ref,
                          kt_ref, mv_ref,
                          wp_ref, bp_ref,
                          wd_ref, bd_ref,
                          o_ref,
                          f1p, f2p):
    f32 = jnp.float32

    # Padded VMEM scratches: borders stay zero, interiors are overwritten below.
    # (Zeroed every grid step so each core's scratch instance is always valid.)
    f1p[...] = jnp.zeros(f1p.shape, f32)
    f2p[...] = jnp.zeros(f2p.shape, f32)

    # ---- encoder stage 1: 3x3 / stride 1 / pad 1, C_IN -> C1, ReLU ----------
    # Input arrives in padded space-to-depth layout:
    #   xz[0, A, B, (rp*2+cp)*C_IN + c] = x_padded[2A+rp, 2B+cp, c]
    # All 4 output-parity classes are computed with ONE matmul against a
    # host-scattered fused weight matrix (64 = 4 spatial slices x 4 parities x C_IN).
    x00 = xz_ref[0, 0:8, 0:8, :].reshape(64, 4 * C_IN)
    x01 = xz_ref[0, 0:8, 1:9, :].reshape(64, 4 * C_IN)
    x10 = xz_ref[0, 1:9, 0:8, :].reshape(64, 4 * C_IN)
    x11 = xz_ref[0, 1:9, 1:9, :].reshape(64, 4 * C_IN)
    slab1 = jnp.concatenate([x00, x01, x10, x11], axis=-1)            # (64, 64)
    f1 = jnp.dot(slab1, w1_ref[...], preferred_element_type=f32)
    f1 = jnp.maximum(f1 + b1_ref[...], 0.0)                           # (64, 4*C1) space-to-depth
    f1p[1:9, 1:9, :] = f1.reshape(8, 8, 4 * C1)

    # global-average-pool of f1 for memorybank.select (fold the 4 parity blocks).
    s1 = jnp.sum(f1, axis=0, keepdims=True)                           # (1, 4*C1)
    pool1 = (s1[:, 0:C1] + s1[:, C1:2 * C1]
             + s1[:, 2 * C1:3 * C1] + s1[:, 3 * C1:4 * C1]) * (1.0 / float(H1 * W1))

    # ---- encoder stage 2: 3x3 / stride 2 / pad 1, C1 -> C2, ReLU ------------
    # f1 sits in (block-padded) space-to-depth form, so every stride-2 tap class
    # is one of 4 contiguous (8, 8, 4*C1) slices; the 9 conv taps are folded into
    # the host-scattered (128, C2) weight matrix.
    t00 = f1p[0:8, 0:8, :].reshape(64, 4 * C1)
    t01 = f1p[0:8, 1:9, :].reshape(64, 4 * C1)
    t10 = f1p[1:9, 0:8, :].reshape(64, 4 * C1)
    t11 = f1p[1:9, 1:9, :].reshape(64, 4 * C1)
    slab2 = jnp.concatenate([t00, t01, t10, t11], axis=-1)            # (64, 128)
    f2 = jnp.dot(slab2, w2_ref[...], preferred_element_type=f32)
    f2 = jnp.maximum(f2 + b2_ref[...], 0.0)                           # (64, C2)
    f2p[1:9, 1:9, :] = f2.reshape(8, 8, C2)
    pool2 = jnp.sum(f2, axis=0, keepdims=True) * (1.0 / float(H2 * W2))

    # ---- encoder stage 3: 3x3 / stride 1 / pad 1, C2 -> C3, ReLU ------------
    pieces = [f2p[di:di + 8, dj:dj + 8, :].reshape(64, C2)
              for di in range(3) for dj in range(3)]
    slab3 = jnp.concatenate(pieces, axis=-1)                          # (64, 9*C2)
    f3 = jnp.dot(slab3, w3_ref[...], preferred_element_type=f32)
    f3 = jnp.maximum(f3 + b3_ref[...], 0.0)                           # (64, C3)

    # ---- internal_conv: 1x1 conv C3 -> C3 on the deepest feature ------------
    emb = jnp.dot(f3, wi_ref[...], preferred_element_type=f32) + bi_ref[...]   # (64, C3)

    # ---- memorybank.select(features_list[0:-1]) -----------------------------
    qry = jnp.concatenate([pool1, pool2], axis=-1)                    # (1, D_MEM)
    logits = jnp.dot(qry, kt_ref[...], preferred_element_type=f32) * _SCALE    # (1, N_MEM)
    m = jnp.max(logits, axis=-1, keepdims=True)
    e = jnp.exp(logits - m)
    attn = e * pl.reciprocal(jnp.sum(e, axis=-1, keepdims=True), approx=True)
    mem = jnp.dot(attn, mv_ref[...], preferred_element_type=f32)      # (1, D_MEM)

    # ---- promote_encoder: linear D_MEM -> C3, ReLU --------------------------
    promote = jnp.dot(mem, wp_ref[...], preferred_element_type=f32)
    promote = jnp.maximum(promote + bp_ref[...], 0.0)                 # (1, C3)

    # ---- decoder: (embedding + promote) -> 1x1 conv C3 -> C_OUT -------------
    h = emb + promote                                                 # in-kernel broadcast
    o_ref[0] = jnp.dot(h, wd_ref[...], preferred_element_type=f32) + bd_ref[...]   # (64, C_OUT)


# ----------------------------- host-side wrapper -----------------------------

def main_model_forward(params, inputs_nchw):
    """inputs: NCHW float32 (PyTorch convention) -> NCHW output."""
    x = jnp.transpose(inputs_nchw, (0, 2, 3, 1)).astype(jnp.float32)   # (B, 16, 16, C_IN)
    B = x.shape[0]

    # pad by 1 and rearrange to space-to-depth (2x2 pixel blocks on the channel dim):
    # tiny (10 KB) layout prep in XLA so the kernel only ever does contiguous slices.
    xp = jnp.pad(x, ((0, 0), (1, 1), (1, 1), (0, 0)))                  # (B, 18, 18, C_IN)
    xz = (xp.reshape(B, 9, 2, 9, 2, C_IN)
            .transpose(0, 1, 3, 2, 4, 5)
            .reshape(B, 9, 9, 4 * C_IN))                               # (B, 9, 9, 16)

    weight_args = (
        params["enc1_w"], params["enc1_b"],
        params["enc2_w"], params["enc2_b"],
        params["enc3_w"], params["enc3_b"],
        params["int_w"], params["int_b"],
        params["mem_keys_t"], params["mem_vals"],
        params["prom_w"], params["prom_b"],
        params["dec_w"], params["dec_b"],
    )
    w_map = lambda b: (0, 0)   # all weights/biases are full-array 2D blocks
    in_specs = [pl.BlockSpec((1, 9, 9, 4 * C_IN), lambda b: (b, 0, 0, 0))]
    in_specs += [pl.BlockSpec(a.shape, w_map) for a in weight_args]

    out2d = pl.pallas_call(
        _fused_forward_kernel,
        out_shape=jax.ShapeDtypeStruct((B, H3 * W3, C_OUT), jnp.float32),
        grid=(B,),
        in_specs=in_specs,
        out_specs=pl.BlockSpec((1, H3 * W3, C_OUT), lambda b: (b, 0, 0)),
        scratch_shapes=[
            pltpu.VMEM((9, 9, 4 * C1), jnp.float32),   # f1, padded space-to-depth form
            pltpu.VMEM((10, 10, C2), jnp.float32),     # f2, zero-padded
        ],
        compiler_params=pltpu.CompilerParams(dimension_semantics=("parallel",)),
    )(xz, *weight_args)

    out = out2d.reshape(B, H3, W3, C_OUT)
    return jnp.transpose(out, (0, 3, 1, 2))                            # back to NCHW


# ----------------------------- parameters -----------------------------
# Conv weights are generated in standard (kh, kw, cin, cout) layout and scattered
# host-side (numpy, once at init) into the fused matmul layouts used by the kernel.

def _scatter_stage1(w1):
    """(3,3,C_IN,C1) conv -> (4*4*C_IN, 4*C1) fused space-to-depth matrix.

    rows: (spatial slice m*2+n, input parity rp*2+cp, cin)
    cols: (output parity p*2+q, cout)
    """
    full = np.zeros((16 * C_IN, 4 * C1), np.float32)
    for p in range(2):
        for q in range(2):
            for di in range(3):
                for dj in range(3):
                    a, b = p + di, q + dj
                    m, rp = a // 2, a % 2
                    n, cp = b // 2, b % 2
                    r0 = (m * 2 + n) * (4 * C_IN) + (rp * 2 + cp) * C_IN
                    c0 = (p * 2 + q) * C1
                    full[r0:r0 + C_IN, c0:c0 + C1] = w1[di, dj]
    return full


def _scatter_stage2(w2):
    """(3,3,C1,C2) conv -> (4*4*C1, C2) fused stride-2 matrix over space-to-depth f1.

    rows: (block offset (m+1)*2+(n+1), pixel parity rp*2+cp, cin)
    """
    full = np.zeros((16 * C1, C2), np.float32)
    off = {0: (-1, 1), 1: (0, 0), 2: (0, 1)}   # conv tap -> (block offset, parity)
    for di in range(3):
        for dj in range(3):
            m, rp = off[di]
            n, cp = off[dj]
            r0 = ((m + 1) * 2 + (n + 1)) * (4 * C1) + (rp * 2 + cp) * C1
            full[r0:r0 + C1, :] = w2[di, dj]
    return full


def init_params(key):
    ks = jax.random.split(key, 9)

    def w(k, shape, fan_in):
        a = jax.random.normal(k, shape, jnp.float32) * (1.0 / math.sqrt(float(fan_in)))
        return np.asarray(a)

    w1 = w(ks[0], (3, 3, C_IN, C1), 9 * C_IN)
    w2 = w(ks[1], (3, 3, C1, C2), 9 * C1)
    w3 = w(ks[2], (3, 3, C2, C3), 9 * C2)

    return {
        # stage-1/2 conv weights in fused (scattered) matmul layouts
        "enc1_w": jnp.asarray(_scatter_stage1(w1)),                 # (64, 4*C1)
        "enc1_b": jnp.zeros((1, 4 * C1), jnp.float32),              # per-channel bias tiled x4
        "enc2_w": jnp.asarray(_scatter_stage2(w2)),                 # (128, C2)
        "enc2_b": jnp.zeros((1, C2), jnp.float32),
        # stage-3 conv in im2col layout: rows ordered (tap, cin), tap-major
        "enc3_w": jnp.asarray(w3.reshape(9 * C2, C3)),              # (144, C3)
        "enc3_b": jnp.zeros((1, C3), jnp.float32),
        # internal_conv: 1x1 conv on the deepest feature
        "int_w": jnp.asarray(w(ks[3], (C3, C3), C3)),
        "int_b": jnp.zeros((1, C3), jnp.float32),
        # memorybank: keys stored pre-transposed (Dq, Nmem) so the kernel never transposes
        "mem_keys_t": jnp.asarray(w(ks[4], (D_MEM, N_MEM), D_MEM)),
        "mem_vals": jnp.asarray(w(ks[5], (N_MEM, D_MEM), D_MEM)),
        # promote_encoder: linear D_MEM -> C3 (+ReLU)
        "prom_w": jnp.asarray(w(ks[6], (D_MEM, C3), D_MEM)),
        "prom_b": jnp.zeros((1, C3), jnp.float32),
        # decoder head: 1x1 conv C3 -> C_OUT
        "dec_w": jnp.asarray(w(ks[7], (C3, C_OUT), C3)),
        "dec_b": jnp.zeros((1, C_OUT), jnp.float32),
    }


if __name__ == "__main__":
    key = jax.random.PRNGKey(0)
    pkey, xkey = jax.random.split(key)
    params = init_params(pkey)
    x = jax.random.normal(xkey, (2, C_IN, H_IN, W_IN), jnp.float32)    # NCHW, like PyTorch

    out = jax.jit(main_model_forward)(params, x)
    out = jax.block_until_ready(out)
    assert out.shape == (2, C_OUT, H3, W3), out.shape
    assert bool(jnp.all(jnp.isfinite(out)))
    print("KERNEL_OK")
</pallas_src>

<mosaic_0001>
module attributes {stable_mosaic.version = 11 : i64} {
  func.func @_fused_forward_kernel(%arg0: i32, %arg1: memref<1x9x9x16xf32, #tpu.memory_space<vmem>>, %arg2: memref<64x32xf32, #tpu.memory_space<vmem>>, %arg3: memref<1x32xf32, #tpu.memory_space<vmem>>, %arg4: memref<128x16xf32, #tpu.memory_space<vmem>>, %arg5: memref<1x16xf32, #tpu.memory_space<vmem>>, %arg6: memref<144x32xf32, #tpu.memory_space<vmem>>, %arg7: memref<1x32xf32, #tpu.memory_space<vmem>>, %arg8: memref<32x32xf32, #tpu.memory_space<vmem>>, %arg9: memref<1x32xf32, #tpu.memory_space<vmem>>, %arg10: memref<24x16xf32, #tpu.memory_space<vmem>>, %arg11: memref<16x24xf32, #tpu.memory_space<vmem>>, %arg12: memref<24x32xf32, #tpu.memory_space<vmem>>, %arg13: memref<1x32xf32, #tpu.memory_space<vmem>>, %arg14: memref<32x4xf32, #tpu.memory_space<vmem>>, %arg15: memref<1x4xf32, #tpu.memory_space<vmem>>, %arg16: memref<1x64x4xf32, #tpu.memory_space<vmem>>, %arg17: memref<9x9x32xf32, #tpu.memory_space<vmem>>, %arg18: memref<10x10x16xf32, #tpu.memory_space<vmem>>) attributes {dimension_semantics = [#tpu.dimension_semantics<parallel>], iteration_bounds = array<i64: 2>, scalar_prefetch = 0 : i64, scratch_operands = 2 : i64, tpu.core_type = #tpu.core_type<tc>, window_params = [{transform_indices = @transform_0, window_bounds = array<i64: 1, 9, 9, 16>}, {pipeline_mode = #tpu.pipeline_mode<synchronous>, transform_indices = @transform_1, window_bounds = array<i64: 64, 32>}, {pipeline_mode = #tpu.pipeline_mode<synchronous>, transform_indices = @transform_2, window_bounds = array<i64: 1, 32>}, {pipeline_mode = #tpu.pipeline_mode<synchronous>, transform_indices = @transform_3, window_bounds = array<i64: 128, 16>}, {pipeline_mode = #tpu.pipeline_mode<synchronous>, transform_indices = @transform_4, window_bounds = array<i64: 1, 16>}, {pipeline_mode = #tpu.pipeline_mode<synchronous>, transform_indices = @transform_5, window_bounds = array<i64: 144, 32>}, {pipeline_mode = #tpu.pipeline_mode<synchronous>, transform_indices = @transform_6, window_bounds = array<i64: 1, 32>}, {pipeline_mode = #tpu.pipeline_mode<synchronous>, transform_indices = @transform_7, window_bounds = array<i64: 32, 32>}, {pipeline_mode = #tpu.pipeline_mode<synchronous>, transform_indices = @transform_8, window_bounds = array<i64: 1, 32>}, {pipeline_mode = #tpu.pipeline_mode<synchronous>, transform_indices = @transform_9, window_bounds = array<i64: 24, 16>}, {pipeline_mode = #tpu.pipeline_mode<synchronous>, transform_indices = @transform_10, window_bounds = array<i64: 16, 24>}, {pipeline_mode = #tpu.pipeline_mode<synchronous>, transform_indices = @transform_11, window_bounds = array<i64: 24, 32>}, {pipeline_mode = #tpu.pipeline_mode<synchronous>, transform_indices = @transform_12, window_bounds = array<i64: 1, 32>}, {pipeline_mode = #tpu.pipeline_mode<synchronous>, transform_indices = @transform_13, window_bounds = array<i64: 32, 4>}, {pipeline_mode = #tpu.pipeline_mode<synchronous>, transform_indices = @transform_14, window_bounds = array<i64: 1, 4>}, {transform_indices = @transform_15, window_bounds = array<i64: 1, 64, 4>}]} {
    %cst = arith.constant 0.000000e+00 : f32
    %0 = vector.broadcast %cst : f32 to vector<9x9x32xf32>
    %c0 = arith.constant 0 : index
    %c0_0 = arith.constant 0 : index
    %c0_1 = arith.constant 0 : index
    %1 = vector.load %arg17[%c0, %c0_0, %c0_1] : memref<9x9x32xf32, #tpu.memory_space<vmem>>, vector<9x9x32xf32>
    tpu.vector_store %arg17[%c0, %c0_0, %c0_1], %0 {strides = array<i32>} : memref<9x9x32xf32, #tpu.memory_space<vmem>>, vector<9x9x32xf32>,
    %cst_2 = arith.constant 0.000000e+00 : f32
    %2 = vector.broadcast %cst_2 : f32 to vector<10x10x16xf32>
    %c0_3 = arith.constant 0 : index
    %c0_4 = arith.constant 0 : index
    %c0_5 = arith.constant 0 : index
    %3 = vector.load %arg18[%c0_3, %c0_4, %c0_5] : memref<10x10x16xf32, #tpu.memory_space<vmem>>, vector<10x10x16xf32>
    tpu.vector_store %arg18[%c0_3, %c0_4, %c0_5], %2 {strides = array<i32>} : memref<10x10x16xf32, #tpu.memory_space<vmem>>, vector<10x10x16xf32>,
    %c0_6 = arith.constant 0 : index
    %c0_7 = arith.constant 0 : index
    %c0_8 = arith.constant 0 : index
    %c0_9 = arith.constant 0 : index
    %4 = vector.load %arg1[%c0_6, %c0_7, %c0_8, %c0_9] : memref<1x9x9x16xf32, #tpu.memory_space<vmem>>, vector<1x8x8x16xf32>
    %5 = vector.shape_cast %4 : vector<1x8x8x16xf32> to vector<8x8x16xf32>
    %6 = vector.shape_cast %5 : vector<8x8x16xf32> to vector<64x16xf32>
    %c0_10 = arith.constant 0 : index
    %c0_11 = arith.constant 0 : index
    %c1 = arith.constant 1 : index
    %c0_12 = arith.constant 0 : index
    %7 = vector.load %arg1[%c0_10, %c0_11, %c1, %c0_12] : memref<1x9x9x16xf32, #tpu.memory_space<vmem>>, vector<1x8x8x16xf32>
    %8 = vector.shape_cast %7 : vector<1x8x8x16xf32> to vector<8x8x16xf32>
    %9 = vector.shape_cast %8 : vector<8x8x16xf32> to vector<64x16xf32>
    %c0_13 = arith.constant 0 : index
    %c1_14 = arith.constant 1 : index
    %c0_15 = arith.constant 0 : index
    %c0_16 = arith.constant 0 : index
    %10 = vector.load %arg1[%c0_13, %c1_14, %c0_15, %c0_16] : memref<1x9x9x16xf32, #tpu.memory_space<vmem>>, vector<1x8x8x16xf32>
    %11 = vector.shape_cast %10 : vector<1x8x8x16xf32> to vector<8x8x16xf32>
    %12 = vector.shape_cast %11 : vector<8x8x16xf32> to vector<64x16xf32>
    %c0_17 = arith.constant 0 : index
    %c1_18 = arith.constant 1 : index
    %c1_19 = arith.constant 1 : index
    %c0_20 = arith.constant 0 : index
    %13 = vector.load %arg1[%c0_17, %c1_18, %c1_19, %c0_20] : memref<1x9x9x16xf32, #tpu.memory_space<vmem>>, vector<1x8x8x16xf32>
    %14 = vector.shape_cast %13 : vector<1x8x8x16xf32> to vector<8x8x16xf32>
    %15 = vector.shape_cast %14 : vector<8x8x16xf32> to vector<64x16xf32>
    %16 = tpu.concatenate %6, %9, %12, %15 in 1 : vector<64x16xf32>, vector<64x16xf32>, vector<64x16xf32>, vector<64x16xf32> -> vector<64x64xf32>
    %c0_21 = arith.constant 0 : index
    %c0_22 = arith.constant 0 : index
    %17 = vector.load %arg2[%c0_21, %c0_22] : memref<64x32xf32, #tpu.memory_space<vmem>>, vector<64x32xf32>
    %cst_23 = arith.constant dense<0.000000e+00> : vector<64x32xf32>
    %18 = tpu.matmul %16, %17, %cst_23 {dimension_numbers = #tpu.dot_dimension_numbers<[1], [0], [0], [1], [0, 0, 1, 1], [], []>} : vector<64x64xf32>, vector<64x32xf32>, vector<64x32xf32> -> vector<64x32xf32>
    %c0_24 = arith.constant 0 : index
    %c0_25 = arith.constant 0 : index
    %19 = vector.load %arg3[%c0_24, %c0_25] : memref<1x32xf32, #tpu.memory_space<vmem>>, vector<1x32xf32>
    %20 = vector.broadcast %19 : vector<1x32xf32> to vector<64x32xf32>
    %21 = arith.addf %18, %20 : vector<64x32xf32>
    %cst_26 = arith.constant 0.000000e+00 : f32
    %22 = vector.broadcast %cst_26 : f32 to vector<64x32xf32>
    %23 = arith.maximumf %21, %22 : vector<64x32xf32>
    %24 = vector.shape_cast %23 : vector<64x32xf32> to vector<8x8x32xf32>
    %c1_27 = arith.constant 1 : index
    %c1_28 = arith.constant 1 : index
    %c0_29 = arith.constant 0 : index
    %25 = vector.load %arg17[%c1_27, %c1_28, %c0_29] : memref<9x9x32xf32, #tpu.memory_space<vmem>>, vector<8x8x32xf32>
    tpu.vector_store %arg17[%c1_27, %c1_28, %c0_29], %24 {strides = array<i32>} : memref<9x9x32xf32, #tpu.memory_space<vmem>>, vector<8x8x32xf32>,
    %cst_30 = arith.constant dense<0.000000e+00> : vector<32xf32>
    %26 = vector.multi_reduction <add>, %23, %cst_30 [0] : vector<64x32xf32> to vector<32xf32>
    %27 = vector.shape_cast %26 : vector<32xf32> to vector<1x32xf32>
    %28 = vector.extract_strided_slice %27 {offsets = [0, 0], sizes = [1, 8], strides = [1, 1]} : vector<1x32xf32> to vector<1x8xf32>
    %29 = vector.extract_strided_slice %27 {offsets = [0, 8], sizes = [1, 8], strides = [1, 1]} : vector<1x32xf32> to vector<1x8xf32>
    %30 = arith.addf %28, %29 : vector<1x8xf32>
    %31 = vector.extract_strided_slice %27 {offsets = [0, 16], sizes = [1, 8], strides = [1, 1]} : vector<1x32xf32> to vector<1x8xf32>
    %32 = arith.addf %30, %31 : vector<1x8xf32>
    %33 = vector.extract_strided_slice %27 {offsets = [0, 24], sizes = [1, 8], strides = [1, 1]} : vector<1x32xf32> to vector<1x8xf32>
    %34 = arith.addf %32, %33 : vector<1x8xf32>
    %cst_31 = arith.constant 3.906250e-03 : f32
    %35 = vector.broadcast %cst_31 : f32 to vector<1x8xf32>
    %36 = arith.mulf %34, %35 : vector<1x8xf32>
    %c0_32 = arith.constant 0 : index
    %c0_33 = arith.constant 0 : index
    %c0_34 = arith.constant 0 : index
    %37 = vector.load %arg17[%c0_32, %c0_33, %c0_34] : memref<9x9x32xf32, #tpu.memory_space<vmem>>, vector<8x8x32xf32>
    %38 = vector.shape_cast %37 : vector<8x8x32xf32> to vector<64x32xf32>
    %c0_35 = arith.constant 0 : index
    %c1_36 = arith.constant 1 : index
    %c0_37 = arith.constant 0 : index
    %39 = vector.load %arg17[%c0_35, %c1_36, %c0_37] : memref<9x9x32xf32, #tpu.memory_space<vmem>>, vector<8x8x32xf32>
    %40 = vector.shape_cast %39 : vector<8x8x32xf32> to vector<64x32xf32>
    %c1_38 = arith.constant 1 : index
    %c0_39 = arith.constant 0 : index
    %c0_40 = arith.constant 0 : index
    %41 = vector.load %arg17[%c1_38, %c0_39, %c0_40] : memref<9x9x32xf32, #tpu.memory_space<vmem>>, vector<8x8x32xf32>
    %42 = vector.shape_cast %41 : vector<8x8x32xf32> to vector<64x32xf32>
    %c1_41 = arith.constant 1 : index
    %c1_42 = arith.constant 1 : index
    %c0_43 = arith.constant 0 : index
    %43 = vector.load %arg17[%c1_41, %c1_42, %c0_43] : memref<9x9x32xf32, #tpu.memory_space<vmem>>, vector<8x8x32xf32>
    %44 = vector.shape_cast %43 : vector<8x8x32xf32> to vector<64x32xf32>
    %45 = tpu.concatenate %38, %40, %42, %44 in 1 : vector<64x32xf32>, vector<64x32xf32>, vector<64x32xf32>, vector<64x32xf32> -> vector<64x128xf32>
    %c0_44 = arith.constant 0 : index
    %c0_45 = arith.constant 0 : index
    %46 = vector.load %arg4[%c0_44, %c0_45] : memref<128x16xf32, #tpu.memory_space<vmem>>, vector<128x16xf32>
    %cst_46 = arith.constant dense<0.000000e+00> : vector<64x16xf32>
    %47 = tpu.matmul %45, %46, %cst_46 {dimension_numbers = #tpu.dot_dimension_numbers<[1], [0], [0], [1], [0, 0, 1, 1], [], []>} : vector<64x128xf32>, vector<128x16xf32>, vector<64x16xf32> -> vector<64x16xf32>
    %c0_47 = arith.constant 0 : index
    %c0_48 = arith.constant 0 : index
    %48 = vector.load %arg5[%c0_47, %c0_48] : memref<1x16xf32, #tpu.memory_space<vmem>>, vector<1x16xf32>
    %49 = vector.broadcast %48 : vector<1x16xf32> to vector<64x16xf32>
    %50 = arith.addf %47, %49 : vector<64x16xf32>
    %cst_49 = arith.constant 0.000000e+00 : f32
    %51 = vector.broadcast %cst_49 : f32 to vector<64x16xf32>
    %52 = arith.maximumf %50, %51 : vector<64x16xf32>
    %53 = vector.shape_cast %52 : vector<64x16xf32> to vector<8x8x16xf32>
    %c1_50 = arith.constant 1 : index
    %c1_51 = arith.constant 1 : index
    %c0_52 = arith.constant 0 : index
    %54 = vector.load %arg18[%c1_50, %c1_51, %c0_52] : memref<10x10x16xf32, #tpu.memory_space<vmem>>, vector<8x8x16xf32>
    tpu.vector_store %arg18[%c1_50, %c1_51, %c0_52], %53 {strides = array<i32>} : memref<10x10x16xf32, #tpu.memory_space<vmem>>, vector<8x8x16xf32>,
    %cst_53 = arith.constant dense<0.000000e+00> : vector<16xf32>
    %55 = vector.multi_reduction <add>, %52, %cst_53 [0] : vector<64x16xf32> to vector<16xf32>
    %56 = vector.shape_cast %55 : vector<16xf32> to vector<1x16xf32>
    %cst_54 = arith.constant 1.562500e-02 : f32
    %57 = vector.broadcast %cst_54 : f32 to vector<1x16xf32>
    %58 = arith.mulf %56, %57 : vector<1x16xf32>
    %c0_55 = arith.constant 0 : index
    %c0_56 = arith.constant 0 : index
    %c0_57 = arith.constant 0 : index
    %59 = vector.load %arg18[%c0_55, %c0_56, %c0_57] : memref<10x10x16xf32, #tpu.memory_space<vmem>>, vector<8x8x16xf32>
    %60 = vector.shape_cast %59 : vector<8x8x16xf32> to vector<64x16xf32>
    %c0_58 = arith.constant 0 : index
    %c1_59 = arith.constant 1 : index
    %c0_60 = arith.constant 0 : index
    %61 = vector.load %arg18[%c0_58, %c1_59, %c0_60] : memref<10x10x16xf32, #tpu.memory_space<vmem>>, vector<8x8x16xf32>
    %62 = vector.shape_cast %61 : vector<8x8x16xf32> to vector<64x16xf32>
    %c0_61 = arith.constant 0 : index
    %c2 = arith.constant 2 : index
    %c0_62 = arith.constant 0 : index
    %63 = vector.load %arg18[%c0_61, %c2, %c0_62] : memref<10x10x16xf32, #tpu.memory_space<vmem>>, vector<8x8x16xf32>
    %64 = vector.shape_cast %63 : vector<8x8x16xf32> to vector<64x16xf32>
    %c1_63 = arith.constant 1 : index
    %c0_64 = arith.constant 0 : index
    %c0_65 = arith.constant 0 : index
    %65 = vector.load %arg18[%c1_63, %c0_64, %c0_65] : memref<10x10x16xf32, #tpu.memory_space<vmem>>, vector<8x8x16xf32>
    %66 = vector.shape_cast %65 : vector<8x8x16xf32> to vector<64x16xf32>
    %c1_66 = arith.constant 1 : index
    %c1_67 = arith.constant 1 : index
    %c0_68 = arith.constant 0 : index
    %67 = vector.load %arg18[%c1_66, %c1_67, %c0_68] : memref<10x10x16xf32, #tpu.memory_space<vmem>>, vector<8x8x16xf32>
    %68 = vector.shape_cast %67 : vector<8x8x16xf32> to vector<64x16xf32>
    %c1_69 = arith.constant 1 : index
    %c2_70 = arith.constant 2 : index
    %c0_71 = arith.constant 0 : index
    %69 = vector.load %arg18[%c1_69, %c2_70, %c0_71] : memref<10x10x16xf32, #tpu.memory_space<vmem>>, vector<8x8x16xf32>
    %70 = vector.shape_cast %69 : vector<8x8x16xf32> to vector<64x16xf32>
    %c2_72 = arith.constant 2 : index
    %c0_73 = arith.constant 0 : index
    %c0_74 = arith.constant 0 : index
    %71 = vector.load %arg18[%c2_72, %c0_73, %c0_74] : memref<10x10x16xf32, #tpu.memory_space<vmem>>, vector<8x8x16xf32>
    %72 = vector.shape_cast %71 : vector<8x8x16xf32> to vector<64x16xf32>
    %c2_75 = arith.constant 2 : index
    %c1_76 = arith.constant 1 : index
    %c0_77 = arith.constant 0 : index
    %73 = vector.load %arg18[%c2_75, %c1_76, %c0_77] : memref<10x10x16xf32, #tpu.memory_space<vmem>>, vector<8x8x16xf32>
    %74 = vector.shape_cast %73 : vector<8x8x16xf32> to vector<64x16xf32>
    %c2_78 = arith.constant 2 : index
    %c2_79 = arith.constant 2 : index
    %c0_80 = arith.constant 0 : index
    %75 = vector.load %arg18[%c2_78, %c2_79, %c0_80] : memref<10x10x16xf32, #tpu.memory_space<vmem>>, vector<8x8x16xf32>
    %76 = vector.shape_cast %75 : vector<8x8x16xf32> to vector<64x16xf32>
    %77 = tpu.concatenate %60, %62, %64, %66, %68, %70, %72, %74, %76 in 1 : vector<64x16xf32>, vector<64x16xf32>, vector<64x16xf32>, vector<64x16xf32>, vector<64x16xf32>, vector<64x16xf32>, vector<64x16xf32>, vector<64x16xf32>, vector<64x16xf32> -> vector<64x144xf32>
    %c0_81 = arith.constant 0 : index
    %c0_82 = arith.constant 0 : index
    %78 = vector.load %arg6[%c0_81, %c0_82] : memref<144x32xf32, #tpu.memory_space<vmem>>, vector<144x32xf32>
    %cst_83 = arith.constant dense<0.000000e+00> : vector<64x32xf32>
    %79 = tpu.matmul %77, %78, %cst_83 {dimension_numbers = #tpu.dot_dimension_numbers<[1], [0], [0], [1], [0, 0, 1, 1], [], []>} : vector<64x144xf32>, vector<144x32xf32>, vector<64x32xf32> -> vector<64x32xf32>
    %c0_84 = arith.constant 0 : index
    %c0_85 = arith.constant 0 : index
    %80 = vector.load %arg7[%c0_84, %c0_85] : memref<1x32xf32, #tpu.memory_space<vmem>>, vector<1x32xf32>
    %81 = vector.broadcast %80 : vector<1x32xf32> to vector<64x32xf32>
    %82 = arith.addf %79, %81 : vector<64x32xf32>
    %cst_86 = arith.constant 0.000000e+00 : f32
    %83 = vector.broadcast %cst_86 : f32 to vector<64x32xf32>
    %84 = arith.maximumf %82, %83 : vector<64x32xf32>
    %c0_87 = arith.constant 0 : index
    %c0_88 = arith.constant 0 : index
    %85 = vector.load %arg8[%c0_87, %c0_88] : memref<32x32xf32, #tpu.memory_space<vmem>>, vector<32x32xf32>
    %cst_89 = arith.constant dense<0.000000e+00> : vector<64x32xf32>
    %86 = tpu.matmul %84, %85, %cst_89 {dimension_numbers = #tpu.dot_dimension_numbers<[1], [0], [0], [1], [0, 0, 1, 1], [], []>} : vector<64x32xf32>, vector<32x32xf32>, vector<64x32xf32> -> vector<64x32xf32>
    %c0_90 = arith.constant 0 : index
    %c0_91 = arith.constant 0 : index
    %87 = vector.load %arg9[%c0_90, %c0_91] : memref<1x32xf32, #tpu.memory_space<vmem>>, vector<1x32xf32>
    %88 = vector.broadcast %87 : vector<1x32xf32> to vector<64x32xf32>
    %89 = arith.addf %86, %88 : vector<64x32xf32>
    %90 = tpu.concatenate %36, %58 in 1 : vector<1x8xf32>, vector<1x16xf32> -> vector<1x24xf32>
    %c0_92 = arith.constant 0 : index
    %c0_93 = arith.constant 0 : index
    %91 = vector.load %arg10[%c0_92, %c0_93] : memref<24x16xf32, #tpu.memory_space<vmem>>, vector<24x16xf32>
    %cst_94 = arith.constant dense<0.000000e+00> : vector<1x16xf32>
    %92 = tpu.matmul %90, %91, %cst_94 {dimension_numbers = #tpu.dot_dimension_numbers<[1], [0], [0], [1], [0, 0, 1, 1], [], []>} : vector<1x24xf32>, vector<24x16xf32>, vector<1x16xf32> -> vector<1x16xf32>
    %cst_95 = arith.constant 0.204124153 : f32
    %93 = vector.broadcast %cst_95 : f32 to vector<1x16xf32>
    %94 = arith.mulf %92, %93 : vector<1x16xf32>
    %cst_96 = arith.constant dense<0xFF800000> : vector<1xf32>
    %95 = vector.multi_reduction <maximumf>, %94, %cst_96 [1] : vector<1x16xf32> to vector<1xf32>
    %96 = vector.shape_cast %95 : vector<1xf32> to vector<1x1xf32>
    %97 = vector.broadcast %96 : vector<1x1xf32> to vector<1x16xf32>
    %98 = arith.subf %94, %97 : vector<1x16xf32>
    %99 = math.exp %98 : vector<1x16xf32>
    %cst_97 = arith.constant dense<0.000000e+00> : vector<1xf32>
    %100 = vector.multi_reduction <add>, %99, %cst_97 [1] : vector<1x16xf32> to vector<1xf32>
    %101 = vector.shape_cast %100 : vector<1xf32> to vector<1x1xf32>
    %102 = tpu.reciprocal %101 {approx = true} : vector<1x1xf32> -> vector<1x1xf32>
    %103 = vector.broadcast %102 : vector<1x1xf32> to vector<1x16xf32>
    %104 = arith.mulf %99, %103 : vector<1x16xf32>
    %c0_98 = arith.constant 0 : index
    %c0_99 = arith.constant 0 : index
    %105 = vector.load %arg11[%c0_98, %c0_99] : memref<16x24xf32, #tpu.memory_space<vmem>>, vector<16x24xf32>
    %cst_100 = arith.constant dense<0.000000e+00> : vector<1x24xf32>
    %106 = tpu.matmul %104, %105, %cst_100 {dimension_numbers = #tpu.dot_dimension_numbers<[1], [0], [0], [1], [0, 0, 1, 1], [], []>} : vector<1x16xf32>, vector<16x24xf32>, vector<1x24xf32> -> vector<1x24xf32>
    %c0_101 = arith.constant 0 : index
    %c0_102 = arith.constant 0 : index
    %107 = vector.load %arg12[%c0_101, %c0_102] : memref<24x32xf32, #tpu.memory_space<vmem>>, vector<24x32xf32>
    %cst_103 = arith.constant dense<0.000000e+00> : vector<1x32xf32>
    %108 = tpu.matmul %106, %107, %cst_103 {dimension_numbers = #tpu.dot_dimension_numbers<[1], [0], [0], [1], [0, 0, 1, 1], [], []>} : vector<1x24xf32>, vector<24x32xf32>, vector<1x32xf32> -> vector<1x32xf32>
    %c0_104 = arith.constant 0 : index
    %c0_105 = arith.constant 0 : index
    %109 = vector.load %arg13[%c0_104, %c0_105] : memref<1x32xf32, #tpu.memory_space<vmem>>, vector<1x32xf32>
    %110 = arith.addf %108, %109 : vector<1x32xf32>
    %cst_106 = arith.constant 0.000000e+00 : f32
    %111 = vector.broadcast %cst_106 : f32 to vector<1x32xf32>
    %112 = arith.maximumf %110, %111 : vector<1x32xf32>
    %113 = vector.broadcast %112 : vector<1x32xf32> to vector<64x32xf32>
    %114 = arith.addf %89, %113 : vector<64x32xf32>
    %c0_107 = arith.constant 0 : index
    %c0_108 = arith.constant 0 : index
    %115 = vector.load %arg14[%c0_107, %c0_108] : memref<32x4xf32, #tpu.memory_space<vmem>>, vector<32x4xf32>
    %cst_109 = arith.constant dense<0.000000e+00> : vector<64x4xf32>
    %116 = tpu.matmul %114, %115, %cst_109 {dimension_numbers = #tpu.dot_dimension_numbers<[1], [0], [0], [1], [0, 0, 1, 1], [], []>} : vector<64x32xf32>, vector<32x4xf32>, vector<64x4xf32> -> vector<64x4xf32>
    %c0_110 = arith.constant 0 : index
    %c0_111 = arith.constant 0 : index
    %117 = vector.load %arg15[%c0_110, %c0_111] : memref<1x4xf32, #tpu.memory_space<vmem>>, vector<1x4xf32>
    %118 = vector.broadcast %117 : vector<1x4xf32> to vector<64x4xf32>
    %119 = arith.addf %116, %118 : vector<64x4xf32>
    %c0_112 = arith.constant 0 : index
    %c0_113 = arith.constant 0 : index
    %c0_114 = arith.constant 0 : index
    %120 = vector.load %arg16[%c0_112, %c0_113, %c0_114] : memref<1x64x4xf32, #tpu.memory_space<vmem>>, vector<1x64x4xf32>
    %121 = vector.shape_cast %120 : vector<1x64x4xf32> to vector<64x4xf32>
    %122 = vector.shape_cast %119 : vector<64x4xf32> to vector<1x64x4xf32>
    tpu.vector_store %arg16[%c0_112, %c0_113, %c0_114], %122 {strides = array<i32>} : memref<1x64x4xf32, #tpu.memory_space<vmem>>, vector<1x64x4xf32>,
    return
  }
  func.func @transform_0(%arg0: i32) -> (i32, i32, i32, i32) {
    %c0_i32 = arith.constant 0 : i32
    %c0_i32_0 = arith.constant 0 : i32
    %c0_i32_1 = arith.constant 0 : i32
    %c0_i32_2 = arith.constant 0 : i32
    return %arg0, %c0_i32, %c0_i32_0, %c0_i32_1 : i32, i32, i32, i32
  }
  func.func @transform_1(%arg0: i32) -> (i32, i32) {
    %c0_i32 = arith.constant 0 : i32
    %c0_i32_0 = arith.constant 0 : i32
    %c0_i32_1 = arith.constant 0 : i32
    return %c0_i32, %c0_i32_0 : i32, i32
  }
  func.func @transform_2(%arg0: i32) -> (i32, i32) {
    %c0_i32 = arith.constant 0 : i32
    %c0_i32_0 = arith.constant 0 : i32
    %c0_i32_1 = arith.constant 0 : i32
    return %c0_i32, %c0_i32_0 : i32, i32
  }
  func.func @transform_3(%arg0: i32) -> (i32, i32) {
    %c0_i32 = arith.constant 0 : i32
    %c0_i32_0 = arith.constant 0 : i32
    %c0_i32_1 = arith.constant 0 : i32
    return %c0_i32, %c0_i32_0 : i32, i32
  }
  func.func @transform_4(%arg0: i32) -> (i32, i32) {
    %c0_i32 = arith.constant 0 : i32
    %c0_i32_0 = arith.constant 0 : i32
    %c0_i32_1 = arith.constant 0 : i32
    return %c0_i32, %c0_i32_0 : i32, i32
  }
  func.func @transform_5(%arg0: i32) -> (i32, i32) {
    %c0_i32 = arith.constant 0 : i32
    %c0_i32_0 = arith.constant 0 : i32
    %c0_i32_1 = arith.constant 0 : i32
    return %c0_i32, %c0_i32_0 : i32, i32
  }
  func.func @transform_6(%arg0: i32) -> (i32, i32) {
    %c0_i32 = arith.constant 0 : i32
    %c0_i32_0 = arith.constant 0 : i32
    %c0_i32_1 = arith.constant 0 : i32
    return %c0_i32, %c0_i32_0 : i32, i32
  }
  func.func @transform_7(%arg0: i32) -> (i32, i32) {
    %c0_i32 = arith.constant 0 : i32
    %c0_i32_0 = arith.constant 0 : i32
    %c0_i32_1 = arith.constant 0 : i32
    return %c0_i32, %c0_i32_0 : i32, i32
  }
  func.func @transform_8(%arg0: i32) -> (i32, i32) {
    %c0_i32 = arith.constant 0 : i32
    %c0_i32_0 = arith.constant 0 : i32
    %c0_i32_1 = arith.constant 0 : i32
    return %c0_i32, %c0_i32_0 : i32, i32
  }
  func.func @transform_9(%arg0: i32) -> (i32, i32) {
    %c0_i32 = arith.constant 0 : i32
    %c0_i32_0 = arith.constant 0 : i32
    %c0_i32_1 = arith.constant 0 : i32
    return %c0_i32, %c0_i32_0 : i32, i32
  }
  func.func @transform_10(%arg0: i32) -> (i32, i32) {
    %c0_i32 = arith.constant 0 : i32
    %c0_i32_0 = arith.constant 0 : i32
    %c0_i32_1 = arith.constant 0 : i32
    return %c0_i32, %c0_i32_0 : i32, i32
  }
  func.func @transform_11(%arg0: i32) -> (i32, i32) {
    %c0_i32 = arith.constant 0 : i32
    %c0_i32_0 = arith.constant 0 : i32
    %c0_i32_1 = arith.constant 0 : i32
    return %c0_i32, %c0_i32_0 : i32, i32
  }
  func.func @transform_12(%arg0: i32) -> (i32, i32) {
    %c0_i32 = arith.constant 0 : i32
    %c0_i32_0 = arith.constant 0 : i32
    %c0_i32_1 = arith.constant 0 : i32
    return %c0_i32, %c0_i32_0 : i32, i32
  }
  func.func @transform_13(%arg0: i32) -> (i32, i32) {
    %c0_i32 = arith.constant 0 : i32
    %c0_i32_0 = arith.constant 0 : i32
    %c0_i32_1 = arith.constant 0 : i32
    return %c0_i32, %c0_i32_0 : i32, i32
  }
  func.func @transform_14(%arg0: i32) -> (i32, i32) {
    %c0_i32 = arith.constant 0 : i32
    %c0_i32_0 = arith.constant 0 : i32
    %c0_i32_1 = arith.constant 0 : i32
    return %c0_i32, %c0_i32_0 : i32, i32
  }
  func.func @transform_15(%arg0: i32) -> (i32, i32, i32) {
    %c0_i32 = arith.constant 0 : i32
    %c0_i32_0 = arith.constant 0 : i32
    %c0_i32_1 = arith.constant 0 : i32
    return %arg0, %c0_i32, %c0_i32_0 : i32, i32, i32
  }
}

</mosaic_0001>

<llo_original>
// kernel: main_model_forward.1
$region0: #{main_model_forward.1}
  #allocation0 [shape = 'u32[]', space=smem, size = 0x4, offset = 0x4, fixed_abs, tag = 'smem constant byte address 0x4 - core index']
  #allocation1 [shape = 'u32[72,128]{1,0:T(1,128)}', space=vmem, size = 0x9000, scoped, tag = 'internal scratch']
  #allocation2 [shape = 'f32[9,9,32]{2,1,0:T(8,128)}', space=vmem, size = 0x12000, scoped, tag = 'scratch operand']
  #allocation3 [shape = 'f32[10,10,16]{2,1,0:T(8,128)}', space=vmem, size = 0x14000, scoped, tag = 'scratch operand']
  %s0 = inlined_call_operand.vmem [shape: f32[2,9,9,16], index: 0, kind: input, shape index: {}]
  %s1 = inlined_call_operand.vmem [shape: f32[64,32], index: 1, kind: input, shape index: {}]
  %s2 = inlined_call_operand.vmem [shape: f32[1,32], index: 2, kind: input, shape index: {}]
  %s3 = inlined_call_operand.vmem [shape: f32[128,16], index: 3, kind: input, shape index: {}]
  %s4 = inlined_call_operand.vmem [shape: f32[1,16], index: 4, kind: input, shape index: {}]
  %s5 = inlined_call_operand.vmem [shape: f32[144,32], index: 5, kind: input, shape index: {}]
  %s6 = inlined_call_operand.vmem [shape: f32[1,32], index: 6, kind: input, shape index: {}]
  %s7 = inlined_call_operand.vmem [shape: f32[32,32], index: 7, kind: input, shape index: {}]
  %s8 = inlined_call_operand.vmem [shape: f32[1,32], index: 8, kind: input, shape index: {}]
  %s9 = inlined_call_operand.vmem [shape: f32[24,16], index: 9, kind: input, shape index: {}]
  %s10 = inlined_call_operand.vmem [shape: f32[16,24], index: 10, kind: input, shape index: {}]
  %s11 = inlined_call_operand.vmem [shape: f32[24,32], index: 11, kind: input, shape index: {}]
  %s12 = inlined_call_operand.vmem [shape: f32[1,32], index: 12, kind: input, shape index: {}]
  %s13 = inlined_call_operand.vmem [shape: f32[32,4], index: 13, kind: input, shape index: {}]
  %s14 = inlined_call_operand.vmem [shape: f32[1,4], index: 14, kind: input, shape index: {}]
  %s15 = inlined_call_operand.vmem [shape: f32[2,64,4], index: 15, kind: output, shape index: {}]
  %s16 = sld [smem:[#allocation0]]
  $region93: #{main_model_forward.1} parent=0
    _
  %s18 = ssub.s32 1, %s16
  %s19 = scalar_select 0, %s18, %s16
  loop: start=0, step=1, limit=4
  $region2: #{main_model_forward.1} parent=0 // loop_pre_header
    _
  $region3: #{main_model_forward.1} parent=0 // loop_header
    %s21 = sphi 0, %s25
    %p22 = scmp.ge.s32.totalorder %s21, 4
    %s31 = sphi 0, %s33
    %s34 = sphi 0, %s31
    %s35 = sphi 0, %s34
    %s51 = sphi 0, %s35
    %s55 = sphi 0, %s55
    %s57 = sphi 0, %s55
    %s58 = sphi 0, %s57
    %s72 = sphi 0, %s58
    %s76 = sphi 0, %s76
    %s78 = sphi 0, %s76
    %s79 = sphi 0, %s78
    %s93 = sphi 0, %s79
    %s97 = sphi 0, %s97
    %s99 = sphi 0, %s97
    %s100 = sphi 0, %s99
    %s114 = sphi 0, %s100
    %s118 = sphi 0, %s118
    %s120 = sphi 0, %s118
    %s121 = sphi 0, %s120
    %s135 = sphi 0, %s121
    %s139 = sphi 0, %s139
    %s141 = sphi 0, %s139
    %s142 = sphi 0, %s141
    %s156 = sphi 0, %s142
    %s160 = sphi 0, %s160
    %s162 = sphi 0, %s160
    %s163 = sphi 0, %s162
    %s177 = sphi 0, %s163
    %s181 = sphi 0, %s181
    %s183 = sphi 0, %s181
    %s184 = sphi 0, %s183
    %s198 = sphi 0, %s184
    %s202 = sphi 0, %s202
    %s204 = sphi 0, %s202
    %s205 = sphi 0, %s204
    %s219 = sphi 0, %s205
    %s223 = sphi 0, %s223
    %s225 = sphi 0, %s223
    %s226 = sphi 0, %s225
    %s240 = sphi 0, %s226
    %s244 = sphi 0, %s244
    %s246 = sphi 0, %s244
    %s247 = sphi 0, %s246
    %s261 = sphi 0, %s247
    %s265 = sphi 0, %s265
    %s267 = sphi 0, %s265
    %s268 = sphi 0, %s267
    %s282 = sphi 0, %s268
    %s286 = sphi 0, %s286
    %s288 = sphi 0, %s286
    %s289 = sphi 0, %s288
    %s303 = sphi 0, %s289
    %s307 = sphi 0, %s307
    %s309 = sphi 0, %s307
    %s310 = sphi 0, %s309
    %s324 = sphi 0, %s310
    %s328 = sphi 0, %s328
    %s330 = sphi 0, %s328
    %s331 = sphi 0, %s330
    %s345 = sphi 0, %s331
    %s351 = sphi 0, %s353
    %s354 = sphi 0, %s351
    %s355 = sphi 0, %s354
    %s371 = sphi 0, %s355
  $region4: #{main_model_forward.1} parent=0 // loop_header_branch
    %24 = sbr.rel (%p22) target = $region8
  $region5: #{main_model_forward.1} parent=0 // loop_body
    %s26 = ssub.s32 %s21, 1
    %s27 = ssub.s32 %s21, 2
    %s28 = sadd.s32 %s21, 1
    %s29 = ssub.s32 %s21, %s28
    %p30 = scmp.eq.s32.totalorder %s29, 0
    %s32 = sadd.s32 %s31, 1
    %s33 = scalar_select %p30, %s31, %s32
    %p36 = pneg %p30
    %p37 = scmp.eq.s32.totalorder %s21, 1
    %p38 = por %p36, %p37
    %p39 = scmp.ne.s32.totalorder %s31, %s34
    %p40 = scmp.eq.s32.totalorder %s21, 0
    %p41 = por %p39, %p40
    %p42 = scmp.ne.s32.totalorder %s31, %s34
    %p43 = scmp.eq.s32.totalorder %s26, 1
    %p44 = por %p42, %p43
    %p45 = scmp.ne.s32.totalorder %s34, %s35
    %p46 = scmp.eq.s32.totalorder %s26, 0
    %p47 = por %p45, %p46
    %p48 = scmp.ne.s32.totalorder %s34, %s35
    %p49 = scmp.eq.s32.totalorder %s27, 1
    %p50 = por %p48, %p49
    %p52 = scmp.ne.s32.totalorder %s35, %s51
    %p53 = scmp.eq.s32.totalorder %s27, 0
    %p54 = por %p52, %p53
    %s56 = sadd.s32 %s55, 1
    %p59 = scmp.eq.s32.totalorder %s21, 1
    %p60 = scmp.ne.s32.totalorder %s55, %s57
    %p61 = scmp.eq.s32.totalorder %s21, 0
    %p62 = por %p60, %p61
    %p63 = scmp.ne.s32.totalorder %s55, %s57
    %p64 = scmp.eq.s32.totalorder %s26, 1
    %p65 = por %p63, %p64
    %p66 = scmp.ne.s32.totalorder %s57, %s58
    %p67 = scmp.eq.s32.totalorder %s26, 0
    %p68 = por %p66, %p67
    %p69 = scmp.ne.s32.totalorder %s57, %s58
    %p70 = scmp.eq.s32.totalorder %s27, 1
    %p71 = por %p69, %p70
    %p73 = scmp.ne.s32.totalorder %s58, %s72
    %p74 = scmp.eq.s32.totalorder %s27, 0
    %p75 = por %p73, %p74
    %s77 = sadd.s32 %s76, 1
    %p80 = scmp.eq.s32.totalorder %s21, 1
    %p81 = scmp.ne.s32.totalorder %s76, %s78
    %p82 = scmp.eq.s32.totalorder %s21, 0
    %p83 = por %p81, %p82
    %p84 = scmp.ne.s32.totalorder %s76, %s78
    %p85 = scmp.eq.s32.totalorder %s26, 1
    %p86 = por %p84, %p85
    %p87 = scmp.ne.s32.totalorder %s78, %s79
    %p88 = scmp.eq.s32.totalorder %s26, 0
    %p89 = por %p87, %p88
    %p90 = scmp.ne.s32.totalorder %s78, %s79
    %p91 = scmp.eq.s32.totalorder %s27, 1
    %p92 = por %p90, %p91
    %p94 = scmp.ne.s32.totalorder %s79, %s93
    %p95 = scmp.eq.s32.totalorder %s27, 0
    %p96 = por %p94, %p95
    %s98 = sadd.s32 %s97, 1
    %p101 = scmp.eq.s32.totalorder %s21, 1
    %p102 = scmp.ne.s32.totalorder %s97, %s99
    %p103 = scmp.eq.s32.totalorder %s21, 0
    %p104 = por %p102, %p103
    %p105 = scmp.ne.s32.totalorder %s97, %s99
    %p106 = scmp.eq.s32.totalorder %s26, 1
    %p107 = por %p105, %p106
    %p108 = scmp.ne.s32.totalorder %s99, %s100
    %p109 = scmp.eq.s32.totalorder %s26, 0
    %p110 = por %p108, %p109
    %p111 = scmp.ne.s32.totalorder %s99, %s100
    %p112 = scmp.eq.s32.totalorder %s27, 1
    %p113 = por %p111, %p112
    %p115 = scmp.ne.s32.totalorder %s100, %s114
    %p116 = scmp.eq.s32.totalorder %s27, 0
    %p117 = por %p115, %p116
    %s119 = sadd.s32 %s118, 1
    %p122 = scmp.eq.s32.totalorder %s21, 1
    %p123 = scmp.ne.s32.totalorder %s118, %s120
    %p124 = scmp.eq.s32.totalorder %s21, 0
    %p125 = por %p123, %p124
    %p126 = scmp.ne.s32.totalorder %s118, %s120
    %p127 = scmp.eq.s32.totalorder %s26, 1
    %p128 = por %p126, %p127
    %p129 = scmp.ne.s32.totalorder %s120, %s121
    %p130 = scmp.eq.s32.totalorder %s26, 0
    %p131 = por %p129, %p130
    %p132 = scmp.ne.s32.totalorder %s120, %s121
    %p133 = scmp.eq.s32.totalorder %s27, 1
    %p134 = por %p132, %p133
    %p136 = scmp.ne.s32.totalorder %s121, %s135
    %p137 = scmp.eq.s32.totalorder %s27, 0
    %p138 = por %p136, %p137
    %s140 = sadd.s32 %s139, 1
    %p143 = scmp.eq.s32.totalorder %s21, 1
    %p144 = scmp.ne.s32.totalorder %s139, %s141
    %p145 = scmp.eq.s32.totalorder %s21, 0
    %p146 = por %p144, %p145
    %p147 = scmp.ne.s32.totalorder %s139, %s141
    %p148 = scmp.eq.s32.totalorder %s26, 1
    %p149 = por %p147, %p148
    %p150 = scmp.ne.s32.totalorder %s141, %s142
    %p151 = scmp.eq.s32.totalorder %s26, 0
    %p152 = por %p150, %p151
    %p153 = scmp.ne.s32.totalorder %s141, %s142
    %p154 = scmp.eq.s32.totalorder %s27, 1
    %p155 = por %p153, %p154
    %p157 = scmp.ne.s32.totalorder %s142, %s156
    %p158 = scmp.eq.s32.totalorder %s27, 0
    %p159 = por %p157, %p158
    %s161 = sadd.s32 %s160, 1
    %p164 = scmp.eq.s32.totalorder %s21, 1
    %p165 = scmp.ne.s32.totalorder %s160, %s162
    %p166 = scmp.eq.s32.totalorder %s21, 0
    %p167 = por %p165, %p166
    %p168 = scmp.ne.s32.totalorder %s160, %s162
    %p169 = scmp.eq.s32.totalorder %s26, 1
    %p170 = por %p168, %p169
    %p171 = scmp.ne.s32.totalorder %s162, %s163
    %p172 = scmp.eq.s32.totalorder %s26, 0
    %p173 = por %p171, %p172
    %p174 = scmp.ne.s32.totalorder %s162, %s163
    %p175 = scmp.eq.s32.totalorder %s27, 1
    %p176 = por %p174, %p175
    %p178 = scmp.ne.s32.totalorder %s163, %s177
    %p179 = scmp.eq.s32.totalorder %s27, 0
    %p180 = por %p178, %p179
    %s182 = sadd.s32 %s181, 1
    %p185 = scmp.eq.s32.totalorder %s21, 1
    %p186 = scmp.ne.s32.totalorder %s181, %s183
    %p187 = scmp.eq.s32.totalorder %s21, 0
    %p188 = por %p186, %p187
    %p189 = scmp.ne.s32.totalorder %s181, %s183
    %p190 = scmp.eq.s32.totalorder %s26, 1
    %p191 = por %p189, %p190
    %p192 = scmp.ne.s32.totalorder %s183, %s184
    %p193 = scmp.eq.s32.totalorder %s26, 0
    %p194 = por %p192, %p193
    %p195 = scmp.ne.s32.totalorder %s183, %s184
    %p196 = scmp.eq.s32.totalorder %s27, 1
    %p197 = por %p195, %p196
    %p199 = scmp.ne.s32.totalorder %s184, %s198
    %p200 = scmp.eq.s32.totalorder %s27, 0
    %p201 = por %p199, %p200
    %s203 = sadd.s32 %s202, 1
    %p206 = scmp.eq.s32.totalorder %s21, 1
    %p207 = scmp.ne.s32.totalorder %s202, %s204
    %p208 = scmp.eq.s32.totalorder %s21, 0
    %p209 = por %p207, %p208
    %p210 = scmp.ne.s32.totalorder %s202, %s204
    %p211 = scmp.eq.s32.totalorder %s26, 1
    %p212 = por %p210, %p211
    %p213 = scmp.ne.s32.totalorder %s204, %s205
    %p214 = scmp.eq.s32.totalorder %s26, 0
    %p215 = por %p213, %p214
    %p216 = scmp.ne.s32.totalorder %s204, %s205
    %p217 = scmp.eq.s32.totalorder %s27, 1
    %p218 = por %p216, %p217
    %p220 = scmp.ne.s32.totalorder %s205, %s219
    %p221 = scmp.eq.s32.totalorder %s27, 0
    %p222 = por %p220, %p221
    %s224 = sadd.s32 %s223, 1
    %p227 = scmp.eq.s32.totalorder %s21, 1
    %p228 = scmp.ne.s32.totalorder %s223, %s225
    %p229 = scmp.eq.s32.totalorder %s21, 0
    %p230 = por %p228, %p229
    %p231 = scmp.ne.s32.totalorder %s223, %s225
    %p232 = scmp.eq.s32.totalorder %s26, 1
    %p233 = por %p231, %p232
    %p234 = scmp.ne.s32.totalorder %s225, %s226
    %p235 = scmp.eq.s32.totalorder %s26, 0
    %p236 = por %p234, %p235
    %p237 = scmp.ne.s32.totalorder %s225, %s226
    %p238 = scmp.eq.s32.totalorder %s27, 1
    %p239 = por %p237, %p238
    %p241 = scmp.ne.s32.totalorder %s226, %s240
    %p242 = scmp.eq.s32.totalorder %s27, 0
    %p243 = por %p241, %p242
    %s245 = sadd.s32 %s244, 1
    %p248 = scmp.eq.s32.totalorder %s21, 1
    %p249 = scmp.ne.s32.totalorder %s244, %s246
    %p250 = scmp.eq.s32.totalorder %s21, 0
    %p251 = por %p249, %p250
    %p252 = scmp.ne.s32.totalorder %s244, %s246
    %p253 = scmp.eq.s32.totalorder %s26, 1
    %p254 = por %p252, %p253
    %p255 = scmp.ne.s32.totalorder %s246, %s247
    %p256 = scmp.eq.s32.totalorder %s26, 0
    %p257 = por %p255, %p256
    %p258 = scmp.ne.s32.totalorder %s246, %s247
    %p259 = scmp.eq.s32.totalorder %s27, 1
    %p260 = por %p258, %p259
    %p262 = scmp.ne.s32.totalorder %s247, %s261
    %p263 = scmp.eq.s32.totalorder %s27, 0
    %p264 = por %p262, %p263
    %s266 = sadd.s32 %s265, 1
    %p269 = scmp.eq.s32.totalorder %s21, 1
    %p270 = scmp.ne.s32.totalorder %s265, %s267
    %p271 = scmp.eq.s32.totalorder %s21, 0
    %p272 = por %p270, %p271
    %p273 = scmp.ne.s32.totalorder %s265, %s267
    %p274 = scmp.eq.s32.totalorder %s26, 1
    %p275 = por %p273, %p274
    %p276 = scmp.ne.s32.totalorder %s267, %s268
    %p277 = scmp.eq.s32.totalorder %s26, 0
    %p278 = por %p276, %p277
    %p279 = scmp.ne.s32.totalorder %s267, %s268
    %p280 = scmp.eq.s32.totalorder %s27, 1
    %p281 = por %p279, %p280
    %p283 = scmp.ne.s32.totalorder %s268, %s282
    %p284 = scmp.eq.s32.totalorder %s27, 0
    %p285 = por %p283, %p284
    %s287 = sadd.s32 %s286, 1
    %p290 = scmp.eq.s32.totalorder %s21, 1
    %p291 = scmp.ne.s32.totalorder %s286, %s288
    %p292 = scmp.eq.s32.totalorder %s21, 0
    %p293 = por %p291, %p292
    %p294 = scmp.ne.s32.totalorder %s286, %s288
    %p295 = scmp.eq.s32.totalorder %s26, 1
    %p296 = por %p294, %p295
    %p297 = scmp.ne.s32.totalorder %s288, %s289
    %p298 = scmp.eq.s32.totalorder %s26, 0
    %p299 = por %p297, %p298
    %p300 = scmp.ne.s32.totalorder %s288, %s289
    %p301 = scmp.eq.s32.totalorder %s27, 1
    %p302 = por %p300, %p301
    %p304 = scmp.ne.s32.totalorder %s289, %s303
    %p305 = scmp.eq.s32.totalorder %s27, 0
    %p306 = por %p304, %p305
    %s308 = sadd.s32 %s307, 1
    %p311 = scmp.eq.s32.totalorder %s21, 1
    %p312 = scmp.ne.s32.totalorder %s307, %s309
    %p313 = scmp.eq.s32.totalorder %s21, 0
    %p314 = por %p312, %p313
    %p315 = scmp.ne.s32.totalorder %s307, %s309
    %p316 = scmp.eq.s32.totalorder %s26, 1
    %p317 = por %p315, %p316
    %p318 = scmp.ne.s32.totalorder %s309, %s310
    %p319 = scmp.eq.s32.totalorder %s26, 0
    %p320 = por %p318, %p319
    %p321 = scmp.ne.s32.totalorder %s309, %s310
    %p322 = scmp.eq.s32.totalorder %s27, 1
    %p323 = por %p321, %p322
    %p325 = scmp.ne.s32.totalorder %s310, %s324
    %p326 = scmp.eq.s32.totalorder %s27, 0
    %p327 = por %p325, %p326
    %s329 = sadd.s32 %s328, 1
    %p332 = scmp.eq.s32.totalorder %s21, 1
    %p333 = scmp.ne.s32.totalorder %s328, %s330
    %p334 = scmp.eq.s32.totalorder %s21, 0
    %p335 = por %p333, %p334
    %p336 = scmp.ne.s32.totalorder %s328, %s330
    %p337 = scmp.eq.s32.totalorder %s26, 1
    %p338 = por %p336, %p337
    %p339 = scmp.ne.s32.totalorder %s330, %s331
    %p340 = scmp.eq.s32.totalorder %s26, 0
    %p341 = por %p339, %p340
    %p342 = scmp.ne.s32.totalorder %s330, %s331
    %p343 = scmp.eq.s32.totalorder %s27, 1
    %p344 = por %p342, %p343
    %p346 = scmp.ne.s32.totalorder %s331, %s345
    %p347 = scmp.eq.s32.totalorder %s27, 0
    %p348 = por %p346, %p347
    %s349 = ssub.s32 %s21, %s28
    %p350 = scmp.eq.s32.totalorder %s349, 0
    %s352 = sadd.s32 %s351, 1
    %s353 = scalar_select %p350, %s351, %s352
    %p356 = pneg %p350
    %p357 = scmp.eq.s32.totalorder %s21, 1
    %p358 = por %p356, %p357
    %p359 = scmp.ne.s32.totalorder %s351, %s354
    %p360 = scmp.eq.s32.totalorder %s21, 0
    %p361 = por %p359, %p360
    %p362 = scmp.ne.s32.totalorder %s351, %s354
    %p363 = scmp.eq.s32.totalorder %s26, 1
    %p364 = por %p362, %p363
    %p365 = scmp.ne.s32.totalorder %s354, %s355
    %p366 = scmp.eq.s32.totalorder %s26, 0
    %p367 = por %p365, %p366
    %p368 = scmp.ne.s32.totalorder %s354, %s355
    %p369 = scmp.eq.s32.totalorder %s27, 1
    %p370 = por %p368, %p369
    %p372 = scmp.ne.s32.totalorder %s355, %s371
    %p373 = scmp.eq.s32.totalorder %s27, 0
    %p374 = por %p372, %p373
    %p375 = scmp.le.s32.totalorder 1, %s21
    %p376 = scmp.lt.s32.totalorder %s21, 3
    %p377 = pnand %p375, %p376
    %p378 = pneg %p377
    // Predicated region
    $region9: #{main_model_forward.1} parent=5 // pred_check
      _
    $region10: #{main_model_forward.1} parent=5 // pred_check_branch
      %380 = sbr.rel (%p377) target = $region12
    $region11: #{main_model_forward.1} parent=5 // pred_region
      %s381 = ssub.s32 %s21, 1
      // Predicated region
      $region13: #{main_model_forward.1} parent=11 // pred_check
        %p382 = pneg %p68
      $region14: #{main_model_forward.1} parent=11 // pred_check_branch
        %384 = sbr.rel (%p382) target = $region16
      $region15: #{main_model_forward.1} parent=11 // pred_region
        _
      $region16: #{main_model_forward.1} parent=11 // pred_fallthru
        _
      // Predicated region
      $region17: #{main_model_forward.1} parent=11 // pred_check
        %p385 = pneg %p89
      $region18: #{main_model_forward.1} parent=11 // pred_check_branch
        %387 = sbr.rel (%p385) target = $region20
      $region19: #{main_model_forward.1} parent=11 // pred_region
        _
      $region20: #{main_model_forward.1} parent=11 // pred_fallthru
        _
      // Predicated region
      $region21: #{main_model_forward.1} parent=11 // pred_check
        %p388 = pneg %p110
      $region22: #{main_model_forward.1} parent=11 // pred_check_branch
        %390 = sbr.rel (%p388) target = $region24
      $region23: #{main_model_forward.1} parent=11 // pred_region
        _
      $region24: #{main_model_forward.1} parent=11 // pred_fallthru
        _
      // Predicated region
      $region25: #{main_model_forward.1} parent=11 // pred_check
        %p391 = pneg %p131
      $region26: #{main_model_forward.1} parent=11 // pred_check_branch
        %393 = sbr.rel (%p391) target = $region28
      $region27: #{main_model_forward.1} parent=11 // pred_region
        _
      $region28: #{main_model_forward.1} parent=11 // pred_fallthru
        _
      // Predicated region
      $region29: #{main_model_forward.1} parent=11 // pred_check
        %p394 = pneg %p152
      $region30: #{main_model_forward.1} parent=11 // pred_check_branch
        %396 = sbr.rel (%p394) target = $region32
      $region31: #{main_model_forward.1} parent=11 // pred_region
        _
      $region32: #{main_model_forward.1} parent=11 // pred_fallthru
        _
      // Predicated region
      $region33: #{main_model_forward.1} parent=11 // pred_check
        %p397 = pneg %p173
      $region34: #{main_model_forward.1} parent=11 // pred_check_branch
        %399 = sbr.rel (%p397) target = $region36
      $region35: #{main_model_forward.1} parent=11 // pred_region
        _
      $region36: #{main_model_forward.1} parent=11 // pred_fallthru
        _
      // Predicated region
      $region37: #{main_model_forward.1} parent=11 // pred_check
        %p400 = pneg %p194
      $region38: #{main_model_forward.1} parent=11 // pred_check_branch
        %402 = sbr.rel (%p400) target = $region40
      $region39: #{main_model_forward.1} parent=11 // pred_region
        _
      $region40: #{main_model_forward.1} parent=11 // pred_fallthru
        _
      // Predicated region
      $region41: #{main_model_forward.1} parent=11 // pred_check
        %p403 = pneg %p215
      $region42: #{main_model_forward.1} parent=11 // pred_check_branch
        %405 = sbr.rel (%p403) target = $region44
      $region43: #{main_model_forward.1} parent=11 // pred_region
        _
      $region44: #{main_model_forward.1} parent=11 // pred_fallthru
        _
      // Predicated region
      $region45: #{main_model_forward.1} parent=11 // pred_check
        %p406 = pneg %p236
      $region46: #{main_model_forward.1} parent=11 // pred_check_branch
        %408 = sbr.rel (%p406) target = $region48
      $region47: #{main_model_forward.1} parent=11 // pred_region
        _
      $region48: #{main_model_forward.1} parent=11 // pred_fallthru
        _
      // Predicated region
      $region49: #{main_model_forward.1} parent=11 // pred_check
        %p409 = pneg %p257
      $region50: #{main_model_forward.1} parent=11 // pred_check_branch
        %411 = sbr.rel (%p409) target = $region52
      $region51: #{main_model_forward.1} parent=11 // pred_region
        _
      $region52: #{main_model_forward.1} parent=11 // pred_fallthru
        _
      // Predicated region
      $region53: #{main_model_forward.1} parent=11 // pred_check
        %p412 = pneg %p278
      $region54: #{main_model_forward.1} parent=11 // pred_check_branch
        %414 = sbr.rel (%p412) target = $region56
      $region55: #{main_model_forward.1} parent=11 // pred_region
        _
      $region56: #{main_model_forward.1} parent=11 // pred_fallthru
        _
      // Predicated region
      $region57: #{main_model_forward.1} parent=11 // pred_check
        %p415 = pneg %p299
      $region58: #{main_model_forward.1} parent=11 // pred_check_branch
        %417 = sbr.rel (%p415) target = $region60
      $region59: #{main_model_forward.1} parent=11 // pred_region
        _
      $region60: #{main_model_forward.1} parent=11 // pred_fallthru
        _
      // Predicated region
      $region61: #{main_model_forward.1} parent=11 // pred_check
        %p418 = pneg %p320
      $region62: #{main_model_forward.1} parent=11 // pred_check_branch
        %420 = sbr.rel (%p418) target = $region64
      $region63: #{main_model_forward.1} parent=11 // pred_region
        _
      $region64: #{main_model_forward.1} parent=11 // pred_fallthru
        _
      // Predicated region
      $region65: #{main_model_forward.1} parent=11 // pred_check
        %p421 = pneg %p341
      $region66: #{main_model_forward.1} parent=11 // pred_check_branch
        %423 = sbr.rel (%p421) target = $region68
      $region67: #{main_model_forward.1} parent=11 // pred_region
        _
      $region68: #{main_model_forward.1} parent=11 // pred_fallthru
        _
    $region12: #{main_model_forward.1} parent=5 // pred_fallthru
      _
    %p424 = scmp.lt.s32.totalorder %s21, 2
    // Predicated region
    $region69: #{main_model_forward.1} parent=5 // pred_check
      %p425 = pneg %p424
    $region70: #{main_model_forward.1} parent=5 // pred_check_branch
      %427 = sbr.rel (%p425) target = $region72
    $region71: #{main_model_forward.1} parent=5 // pred_region
      // Predicated region
      $region73: #{main_model_forward.1} parent=71 // pred_check
        %p428 = pneg %p41
      $region74: #{main_model_forward.1} parent=71 // pred_check_branch
        %430 = sbr.rel (%p428) target = $region76
      $region75: #{main_model_forward.1} parent=71 // pred_region
        %p431 = scmp.lt.s32.totalorder %s21, 1
        %s432 = scalar_select %p431, %s21, 1
        %s433 = smul.addr %s432, 18
        %s434 = smul.addr %s433, 8
        %s435 = scalar_lea.vmem %s0, %s434
      $region76: #{main_model_forward.1} parent=71 // pred_fallthru
        _
    $region72: #{main_model_forward.1} parent=5 // pred_fallthru
      _
    %p436 = scmp.le.s32.totalorder 1, %s21
    %p437 = scmp.lt.s32.totalorder %s21, 3
    %p438 = pnand %p436, %p437
    %p439 = pneg %p438
    // Predicated region
    $region77: #{main_model_forward.1} parent=5 // pred_check
      _
    $region78: #{main_model_forward.1} parent=5 // pred_check_branch
      %441 = sbr.rel (%p438) target = $region80
    $region79: #{main_model_forward.1} parent=5 // pred_region
      %s442 = ssub.s32 %s21, 1
      %p443 = scmp.lt.s32.totalorder %s26, 1
      %s444 = scalar_select %p443, %s26, 1
      %s445 = smul.addr %s444, 18
      %s446 = smul.addr %s445, 8
      %s447 = scalar_lea.vmem %s0, %s446
      %p448 = pneg %p47
      %p449 = pneg %p44
      %p450 = pneg %p68
      %p451 = pneg %p65
      %p452 = pneg %p89
      %p453 = pneg %p86
      %p454 = pneg %p110
      %p455 = pneg %p107
      %p456 = pneg %p131
      %p457 = pneg %p128
      %p458 = pneg %p152
      %p459 = pneg %p149
      %p460 = pneg %p173
      %p461 = pneg %p170
      %p462 = pneg %p194
      %p463 = pneg %p191
      %p464 = pneg %p215
      %p465 = pneg %p212
      %p466 = pneg %p236
      %p467 = pneg %p233
      %p468 = pneg %p257
      %p469 = pneg %p254
      %p470 = pneg %p278
      %p471 = pneg %p275
      %p472 = pneg %p299
      %p473 = pneg %p296
      %p474 = pneg %p320
      %p475 = pneg %p317
      %p476 = pneg %p341
      %p477 = pneg %p338
      %p478 = pneg %p367
      %p479 = pneg %p364
      %p480 = scmp.lt.s32.totalorder %s26, 1
      %s481 = scalar_select %p480, %s26, 1
      %s482 = smul.addr %s481, 8
      %s483 = smul.addr %s482, 8
      %s484 = scalar_lea.vmem %s15, %s483
      %p485 = scmp.lt.s32.totalorder %s26, 1
      %s486 = scalar_select %p485, %s26, 1
      %s487 = smul.addr %s486, 18
      %s488 = smul.addr %s487, 8
      %s489 = scalar_lea.vmem %s0, %s488
      %p490 = scmp.lt.s32.totalorder %s26, 1
      %s491 = scalar_select %p490, %s26, 1
      %s492 = smul.addr %s491, 8
      %s493 = smul.addr %s492, 8
      %s494 = scalar_lea.vmem %s15, %s493
      %vm495 = vcmask 261120
      %496 = vst.msk [vmem:[#allocation2] sm:$0xff] %vm495, 0.0
      %vm497 = vcmask 253952
      %498 = vst.msk [vmem:[#allocation2 + $0x8] sm:$0x1] %vm497, 0.0
      %499 = vst.msk [vmem:[#allocation2 + $0x10] sm:$0xff] %vm495, 0.0
      %500 = vst.msk [vmem:[#allocation2 + $0x18] sm:$0x1] %vm497, 0.0
      %501 = vst.msk [vmem:[#allocation2 + $0x20] sm:$0xff] %vm495, 0.0
      %502 = vst.msk [vmem:[#allocation2 + $0x28] sm:$0x1] %vm497, 0.0
      %503 = vst.msk [vmem:[#allocation2 + $0x30] sm:$0xff] %vm495, 0.0
      %504 = vst.msk [vmem:[#allocation2 + $0x38] sm:$0x1] %vm497, 0.0
      %505 = vst.msk [vmem:[#allocation2 + $0x40] sm:$0xff] %vm495, 0.0
      %506 = vst.msk [vmem:[#allocation2 + $0x48] sm:$0x1] %vm497, 0.0
      %507 = vst.msk [vmem:[#allocation2 + $0x50] sm:$0xff] %vm495, 0.0
      %508 = vst.msk [vmem:[#allocation2 + $0x58] sm:$0x1] %vm497, 0.0
      %509 = vst.msk [vmem:[#allocation2 + $0x60] sm:$0xff] %vm495, 0.0
      %510 = vst.msk [vmem:[#allocation2 + $0x68] sm:$0x1] %vm497, 0.0
      %511 = vst.msk [vmem:[#allocation2 + $0x70] sm:$0xff] %vm495, 0.0
      %512 = vst.msk [vmem:[#allocation2 + $0x78] sm:$0x1] %vm497, 0.0
      %513 = vst.msk [vmem:[#allocation2 + $0x80] sm:$0xff] %vm495, 0.0
      %514 = vst.msk [vmem:[#allocation2 + $0x88] sm:$0x1] %vm497, 0.0
      %vm515 = vcmask 130048
      %516 = vst.msk [vmem:[#allocation3] sm:$0xff] %vm515, 0.0
      %vm517 = vcmask 123904
      %518 = vst.msk [vmem:[#allocation3 + $0x8] sm:$0x3] %vm517, 0.0
      %519 = vst.msk [vmem:[#allocation3 + $0x10] sm:$0xff] %vm515, 0.0
      %520 = vst.msk [vmem:[#allocation3 + $0x18] sm:$0x3] %vm517, 0.0
      %521 = vst.msk [vmem:[#allocation3 + $0x20] sm:$0xff] %vm515, 0.0
      %522 = vst.msk [vmem:[#allocation3 + $0x28] sm:$0x3] %vm517, 0.0
      %523 = vst.msk [vmem:[#allocation3 + $0x30] sm:$0xff] %vm515, 0.0
      %524 = vst.msk [vmem:[#allocation3 + $0x38] sm:$0x3] %vm517, 0.0
      %525 = vst.msk [vmem:[#allocation3 + $0x40] sm:$0xff] %vm515, 0.0
      %526 = vst.msk [vmem:[#allocation3 + $0x48] sm:$0x3] %vm517, 0.0
      %527 = vst.msk [vmem:[#allocation3 + $0x50] sm:$0xff] %vm515, 0.0
      %528 = vst.msk [vmem:[#allocation3 + $0x58] sm:$0x3] %vm517, 0.0
      %529 = vst.msk [vmem:[#allocation3 + $0x60] sm:$0xff] %vm515, 0.0
      %530 = vst.msk [vmem:[#allocation3 + $0x68] sm:$0x3] %vm517, 0.0
      %531 = vst.msk [vmem:[#allocation3 + $0x70] sm:$0xff] %vm515, 0.0
      %532 = vst.msk [vmem:[#allocation3 + $0x78] sm:$0x3] %vm517, 0.0
      %533 = vst.msk [vmem:[#allocation3 + $0x80] sm:$0xff] %vm515, 0.0
      %534 = vst.msk [vmem:[#allocation3 + $0x88] sm:$0x3] %vm517, 0.0
      %535 = vst.msk [vmem:[#allocation3 + $0x90] sm:$0xff] %vm515, 0.0
      %536 = vst.msk [vmem:[#allocation3 + $0x98] sm:$0x3] %vm517, 0.0
      %v537 = vld [vmem:[%s489] sm:$0xff]
      %v538 = vld [vmem:[%s489 + $0x10] sm:$0xff]
      %v539 = vld [vmem:[%s489 + $0x20] sm:$0xff]
      %v540 = vld [vmem:[%s489 + $0x30] sm:$0xff]
      %v541 = vld [vmem:[%s489 + $0x40] sm:$0xff]
      %v542 = vld [vmem:[%s489 + $0x50] sm:$0xff]
      %v543 = vld [vmem:[%s489 + $0x60] sm:$0xff]
      %v544 = vld [vmem:[%s489 + $0x70] sm:$0xff]
      %v545 = vld [vmem:[%s489 + $0x1] sm:$0xff]
      %v546 = vld [vmem:[%s489 + $0x11] sm:$0xff]
      %v547 = vld [vmem:[%s489 + $0x21] sm:$0xff]
      %v548 = vld [vmem:[%s489 + $0x31] sm:$0xff]
      %v549 = vld [vmem:[%s489 + $0x41] sm:$0xff]
      %v550 = vld [vmem:[%s489 + $0x51] sm:$0xff]
      %v551 = vld [vmem:[%s489 + $0x61] sm:$0xff]
      %v552 = vld [vmem:[%s489 + $0x71] sm:$0xff]
      %s553 = scalar_lea.vmem %s489, 16
      %v554 = vld [vmem:[%s553] sm:$0xff]
      %v555 = vld [vmem:[%s553 + $0x10] sm:$0xff]
      %v556 = vld [vmem:[%s553 + $0x20] sm:$0xff]
      %v557 = vld [vmem:[%s553 + $0x30] sm:$0xff]
      %v558 = vld [vmem:[%s553 + $0x40] sm:$0xff]
      %v559 = vld [vmem:[%s553 + $0x50] sm:$0xff]
      %v560 = vld [vmem:[%s553 + $0x60] sm:$0xff]
      %v561 = vld [vmem:[%s553 + $0x70] sm:$0xff]
      %v562 = vld [vmem:[%s553 + $0x1] sm:$0xff]
      %v563 = vld [vmem:[%s553 + $0x11] sm:$0xff]
      %v564 = vld [vmem:[%s553 + $0x21] sm:$0xff]
      %v565 = vld [vmem:[%s553 + $0x31] sm:$0xff]
      %v566 = vld [vmem:[%s553 + $0x41] sm:$0xff]
      %v567 = vld [vmem:[%s553 + $0x51] sm:$0xff]
      %v568 = vld [vmem:[%s553 + $0x61] sm:$0xff]
      %v569 = vld [vmem:[%s553 + $0x71] sm:$0xff]
      %578 = vrot.lane.b32.xlu0 %v545, 16
      %v579 = vpop.permute.xlu0 %578
      %580 = vrot.lane.b32.xlu0 %v546, 16
      %v581 = vpop.permute.xlu0 %580
      %582 = vrot.lane.b32.xlu0 %v547, 16
      %v583 = vpop.permute.xlu0 %582
      %584 = vrot.lane.b32.xlu0 %v548, 16
      %v585 = vpop.permute.xlu0 %584
      %586 = vrot.lane.b32.xlu0 %v549, 16
      %v587 = vpop.permute.xlu0 %586
      %588 = vrot.lane.b32.xlu0 %v550, 16
      %v589 = vpop.permute.xlu0 %588
      %590 = vrot.lane.b32.xlu0 %v551, 16
      %v591 = vpop.permute.xlu0 %590
      %592 = vrot.lane.b32.xlu0 %v552, 16
      %v593 = vpop.permute.xlu0 %592
      %610 = vrot.lane.b32.xlu0 %v554, 32
      %v611 = vpop.permute.xlu0 %610
      %612 = vrot.lane.b32.xlu0 %v555, 32
      %v613 = vpop.permute.xlu0 %612
      %614 = vrot.lane.b32.xlu0 %v556, 32
      %v615 = vpop.permute.xlu0 %614
      %616 = vrot.lane.b32.xlu0 %v557, 32
      %v617 = vpop.permute.xlu0 %616
      %618 = vrot.lane.b32.xlu0 %v558, 32
      %v619 = vpop.permute.xlu0 %618
      %620 = vrot.lane.b32.xlu0 %v559, 32
      %v621 = vpop.permute.xlu0 %620
      %622 = vrot.lane.b32.xlu0 %v560, 32
      %v623 = vpop.permute.xlu0 %622
      %624 = vrot.lane.b32.xlu0 %v561, 32
      %v625 = vpop.permute.xlu0 %624
      %642 = vrot.lane.b32.xlu0 %v562, 48
      %v643 = vpop.permute.xlu0 %642
      %644 = vrot.lane.b32.xlu0 %v563, 48
      %v645 = vpop.permute.xlu0 %644
      %646 = vrot.lane.b32.xlu0 %v564, 48
      %v647 = vpop.permute.xlu0 %646
      %648 = vrot.lane.b32.xlu0 %v565, 48
      %v649 = vpop.permute.xlu0 %648
      %650 = vrot.lane.b32.xlu0 %v566, 48
      %v651 = vpop.permute.xlu0 %650
      %652 = vrot.lane.b32.xlu0 %v567, 48
      %v653 = vpop.permute.xlu0 %652
      %654 = vrot.lane.b32.xlu0 %v568, 48
      %v655 = vpop.permute.xlu0 %654
      %656 = vrot.lane.b32.xlu0 %v569, 48
      %v657 = vpop.permute.xlu0 %656
      %v666 = vsel %vm515, %v537, %v579
      %v667 = vsel %vm515, %v538, %v581
      %v668 = vsel %vm515, %v539, %v583
      %v669 = vsel %vm515, %v540, %v585
      %v670 = vsel %vm515, %v541, %v587
      %v671 = vsel %vm515, %v542, %v589
      %v672 = vsel %vm515, %v543, %v591
      %v673 = vsel %vm515, %v544, %v593
      %v674 = vsel %vm495, %v666, %v611
      %v675 = vsel %vm495, %v667, %v613
      %v676 = vsel %vm495, %v668, %v615
      %v677 = vsel %vm495, %v669, %v617
      %v678 = vsel %vm495, %v670, %v619
      %v679 = vsel %vm495, %v671, %v621
      %v680 = vsel %vm495, %v672, %v623
      %v681 = vsel %vm495, %v673, %v625
      %vm682 = vcmask 392192
      %v683 = vsel %vm682, %v674, %v643
      %v684 = vsel %vm682, %v675, %v645
      %v685 = vsel %vm682, %v676, %v647
      %v686 = vsel %vm682, %v677, %v649
      %v687 = vsel %vm682, %v678, %v651
      %v688 = vsel %vm682, %v679, %v653
      %v689 = vsel %vm682, %v680, %v655
      %v690 = vsel %vm682, %v681, %v657
      %v691 = vld [vmem:[%s1] sm:$0xff]
      %v692 = vld [vmem:[%s1 + $0x8] sm:$0xff]
      %v693 = vld [vmem:[%s1 + $0x10] sm:$0xff]
      %v694 = vld [vmem:[%s1 + $0x18] sm:$0xff]
      %v695 = vld [vmem:[%s1 + $0x20] sm:$0xff]
      %v696 = vld [vmem:[%s1 + $0x28] sm:$0xff]
      %v697 = vld [vmem:[%s1 + $0x30] sm:$0xff]
      %v698 = vld [vmem:[%s1 + $0x38] sm:$0xff]
      %v699 = vld [vmem:[%s2] sm:$0x1]
      %v701 = vperm.slane %v699, 0
      %vm703 = vcmask 523264
      %v705 = vsel %vm703, %v683, 0
      %v708 = vsel %vm703, %v684, 0
      %v711 = vsel %vm703, %v685, 0
      %v714 = vsel %vm703, %v686, 0
      %v717 = vsel %vm703, %v687, 0
      %v720 = vsel %vm703, %v688, 0
      %v723 = vsel %vm703, %v689, 0
      %v726 = vsel %vm703, %v690, 0
      %728 = vmatpush.msra.mxu0 0.0
      %729 = vmatpush.msra.mxu0 0.0
      %730 = vmatpush.msra.mxu0 0.0
      %731 = vmatpush.msra.mxu0 0.0
      %732 = vmatpush.msra.mxu0 0.0
      %733 = vmatpush.msra.mxu0 0.0
      %734 = vmatpush.msra.mxu0 0.0
      %735 = vmatpush.msra.mxu0 0.0
      %736 = vmatpush.msra.mxu0 %v698
      %737 = vmatpush.msra.mxu0 %v697
      %738 = vmatpush.msra.mxu0 %v696
      %739 = vmatpush.msra.mxu0 %v695
      %740 = vmatpush.msra.mxu0 %v694
      %741 = vmatpush.msra.mxu0 %v693
      %742 = vmatpush.msra.mxu0 %v692
      %743 = vmatpush.msra.mxu0 %v691
      %744 = vmatmul.f32.gmra.mxu0 %v705
      %v745 = vpop.f32.mrf.mxu0
      %v746 = vadd.f32 %v701, %v745
      %747 = vmatmul.f32.gmra.mxu0 %v708
      %v748 = vpop.f32.mrf.mxu0
      %v749 = vadd.f32 %v701, %v748
      %750 = vmatmul.f32.gmra.mxu0 %v711
      %v751 = vpop.f32.mrf.mxu0
      %v752 = vadd.f32 %v701, %v751
      %753 = vmatmul.f32.gmra.mxu0 %v714
      %v754 = vpop.f32.mrf.mxu0
      %v755 = vadd.f32 %v701, %v754
      %756 = vmatmul.f32.gmra.mxu0 %v717
      %v757 = vpop.f32.mrf.mxu0
      %v758 = vadd.f32 %v701, %v757
      %759 = vmatmul.f32.gmra.mxu0 %v720
      %v760 = vpop.f32.mrf.mxu0
      %v761 = vadd.f32 %v701, %v760
      %762 = vmatmul.f32.gmra.mxu0 %v723
      %v763 = vpop.f32.mrf.mxu0
      %v764 = vadd.f32 %v701, %v763
      %765 = vmatmul.f32.gmra.mxu0 %v726
      %v766 = vpop.f32.mrf.mxu0
      %v767 = vadd.f32 %v701, %v766
      %768 = vdwg.mxu0
      %v769 = vmax.f32 %v746, 0.0
      %v770 = vmax.f32 %v749, 0.0
      %v771 = vmax.f32 %v752, 0.0
      %v772 = vmax.f32 %v755, 0.0
      %v773 = vmax.f32 %v758, 0.0
      %v774 = vmax.f32 %v761, 0.0
      %v775 = vmax.f32 %v764, 0.0
      %v776 = vmax.f32 %v767, 0.0
      %s777 = scalar_lea.vmem [#allocation2], 16
      %778 = vst.msk [vmem:[%s777 + $0x1] sm:$0xff] %vm495, %v769
      %779 = vst.msk [vmem:[%s777 + $0x11] sm:$0xff] %vm495, %v770
      %780 = vst.msk [vmem:[%s777 + $0x21] sm:$0xff] %vm495, %v771
      %781 = vst.msk [vmem:[%s777 + $0x31] sm:$0xff] %vm495, %v772
      %782 = vst.msk [vmem:[%s777 + $0x41] sm:$0xff] %vm495, %v773
      %783 = vst.msk [vmem:[%s777 + $0x51] sm:$0xff] %vm495, %v774
      %784 = vst.msk [vmem:[%s777 + $0x61] sm:$0xff] %vm495, %v775
      %785 = vst.msk [vmem:[%s777 + $0x71] sm:$0xff] %vm495, %v776
      %v786 = vsel %vm495, %v769, 0.0
      %v787 = vsel %vm495, %v770, 0.0
      %v788 = vadd.f32 %v786, %v787
      %v789 = vsel %vm495, %v771, 0.0
      %v790 = vadd.f32 %v788, %v789
      %v791 = vsel %vm495, %v772, 0.0
      %v792 = vadd.f32 %v790, %v791
      %v793 = vsel %vm495, %v773, 0.0
      %v794 = vadd.f32 %v792, %v793
      %v795 = vsel %vm495, %v774, 0.0
      %v796 = vadd.f32 %v794, %v795
      %v797 = vsel %vm495, %v775, 0.0
      %v798 = vadd.f32 %v796, %v797
      %v799 = vsel %vm495, %v776, 0.0
      %v800 = vadd.f32 %v798, %v799
      %v801 = vrot.slane %v800, 4
      %v802 = vadd.f32 %v800, %v801
      %v803 = vrot.slane %v802, 2
      %v804 = vadd.f32 %v802, %v803
      %v805 = vrot.slane %v804, 1
      %v806 = vadd.f32 %v804, %v805
      %808 = vrot.lane.b32.xlu0 %v806, 120
      %v809 = vpop.permute.xlu0 %808
      %v811 = vadd.f32 %v806, %v809
      %812 = vrot.lane.b32.xlu0 %v806, 112
      %v813 = vpop.permute.xlu0 %812
      %v815 = vadd.f32 %v811, %v813
      %816 = vrot.lane.b32.xlu0 %v806, 104
      %v817 = vpop.permute.xlu0 %816
      %v819 = vadd.f32 %v815, %v817
      %v820 = vmul.f32 %v819, 0.00390625
      %v821 = vld [vmem:[#allocation2] sm:$0xff]
      %v822 = vld [vmem:[#allocation2 + $0x10] sm:$0xff]
      %v823 = vld [vmem:[#allocation2 + $0x20] sm:$0xff]
      %v824 = vld [vmem:[#allocation2 + $0x30] sm:$0xff]
      %v825 = vld [vmem:[#allocation2 + $0x40] sm:$0xff]
      %v826 = vld [vmem:[#allocation2 + $0x50] sm:$0xff]
      %v827 = vld [vmem:[#allocation2 + $0x60] sm:$0xff]
      %v828 = vld [vmem:[#allocation2 + $0x70] sm:$0xff]
      %v829 = vld [vmem:[#allocation2 + $0x1] sm:$0xff]
      %v830 = vld [vmem:[#allocation2 + $0x11] sm:$0xff]
      %v831 = vld [vmem:[#allocation2 + $0x21] sm:$0xff]
      %v832 = vld [vmem:[#allocation2 + $0x31] sm:$0xff]
      %v833 = vld [vmem:[#allocation2 + $0x41] sm:$0xff]
      %v834 = vld [vmem:[#allocation2 + $0x51] sm:$0xff]
      %v835 = vld [vmem:[#allocation2 + $0x61] sm:$0xff]
      %v836 = vld [vmem:[#allocation2 + $0x71] sm:$0xff]
      %v837 = vld [vmem:[%s777] sm:$0xff]
      %v838 = vld [vmem:[%s777 + $0x10] sm:$0xff]
      %v839 = vld [vmem:[%s777 + $0x20] sm:$0xff]
      %v840 = vld [vmem:[%s777 + $0x30] sm:$0xff]
      %v841 = vld [vmem:[%s777 + $0x40] sm:$0xff]
      %v842 = vld [vmem:[%s777 + $0x50] sm:$0xff]
      %v843 = vld [vmem:[%s777 + $0x60] sm:$0xff]
      %v844 = vld [vmem:[%s777 + $0x70] sm:$0xff]
      %v845 = vld [vmem:[%s777 + $0x1] sm:$0xff]
      %v846 = vld [vmem:[%s777 + $0x11] sm:$0xff]
      %v847 = vld [vmem:[%s777 + $0x21] sm:$0xff]
      %v848 = vld [vmem:[%s777 + $0x31] sm:$0xff]
      %v849 = vld [vmem:[%s777 + $0x41] sm:$0xff]
      %v850 = vld [vmem:[%s777 + $0x51] sm:$0xff]
      %v851 = vld [vmem:[%s777 + $0x61] sm:$0xff]
      %v852 = vld [vmem:[%s777 + $0x71] sm:$0xff]
      %861 = vrot.lane.b32.xlu0 %v829, 32
      %v862 = vpop.permute.xlu0 %861
      %863 = vrot.lane.b32.xlu0 %v830, 32
      %v864 = vpop.permute.xlu0 %863
      %865 = vrot.lane.b32.xlu0 %v831, 32
      %v866 = vpop.permute.xlu0 %865
      %867 = vrot.lane.b32.xlu0 %v832, 32
      %v868 = vpop.permute.xlu0 %867
      %869 = vrot.lane.b32.xlu0 %v833, 32
      %v870 = vpop.permute.xlu0 %869
      %871 = vrot.lane.b32.xlu0 %v834, 32
      %v872 = vpop.permute.xlu0 %871
      %873 = vrot.lane.b32.xlu0 %v835, 32
      %v874 = vpop.permute.xlu0 %873
      %875 = vrot.lane.b32.xlu0 %v836, 32
      %v876 = vpop.permute.xlu0 %875
      %893 = vrot.lane.b32.xlu0 %v837, 64
      %v894 = vpop.permute.xlu0 %893
      %895 = vrot.lane.b32.xlu0 %v838, 64
      %v896 = vpop.permute.xlu0 %895
      %897 = vrot.lane.b32.xlu0 %v839, 64
      %v898 = vpop.permute.xlu0 %897
      %899 = vrot.lane.b32.xlu0 %v840, 64
      %v900 = vpop.permute.xlu0 %899
      %901 = vrot.lane.b32.xlu0 %v841, 64
      %v902 = vpop.permute.xlu0 %901
      %903 = vrot.lane.b32.xlu0 %v842, 64
      %v904 = vpop.permute.xlu0 %903
      %905 = vrot.lane.b32.xlu0 %v843, 64
      %v906 = vpop.permute.xlu0 %905
      %907 = vrot.lane.b32.xlu0 %v844, 64
      %v908 = vpop.permute.xlu0 %907
      %925 = vrot.lane.b32.xlu0 %v845, 96
      %v926 = vpop.permute.xlu0 %925
      %927 = vrot.lane.b32.xlu0 %v846, 96
      %v928 = vpop.permute.xlu0 %927
      %929 = vrot.lane.b32.xlu0 %v847, 96
      %v930 = vpop.permute.xlu0 %929
      %931 = vrot.lane.b32.xlu0 %v848, 96
      %v932 = vpop.permute.xlu0 %931
      %933 = vrot.lane.b32.xlu0 %v849, 96
      %v934 = vpop.permute.xlu0 %933
      %935 = vrot.lane.b32.xlu0 %v850, 96
      %v936 = vpop.permute.xlu0 %935
      %937 = vrot.lane.b32.xlu0 %v851, 96
      %v938 = vpop.permute.xlu0 %937
      %939 = vrot.lane.b32.xlu0 %v852, 96
      %v940 = vpop.permute.xlu0 %939
      %v949 = vsel %vm495, %v821, %v862
      %v950 = vsel %vm495, %v822, %v864
      %v951 = vsel %vm495, %v823, %v866
      %v952 = vsel %vm495, %v824, %v868
      %v953 = vsel %vm495, %v825, %v870
      %v954 = vsel %vm495, %v826, %v872
      %v955 = vsel %vm495, %v827, %v874
      %v956 = vsel %vm495, %v828, %v876
      %v957 = vsel %vm703, %v949, %v894
      %v958 = vsel %vm703, %v950, %v896
      %v959 = vsel %vm703, %v951, %v898
      %v960 = vsel %vm703, %v952, %v900
      %v961 = vsel %vm703, %v953, %v902
      %v962 = vsel %vm703, %v954, %v904
      %v963 = vsel %vm703, %v955, %v906
      %v964 = vsel %vm703, %v956, %v908
      %vm965 = vcmask 785408
      %v966 = vsel %vm965, %v957, %v926
      %v967 = vsel %vm965, %v958, %v928
      %v968 = vsel %vm965, %v959, %v930
      %v969 = vsel %vm965, %v960, %v932
      %v970 = vsel %vm965, %v961, %v934
      %v971 = vsel %vm965, %v962, %v936
      %v972 = vsel %vm965, %v963, %v938
      %v973 = vsel %vm965, %v964, %v940
      %v974 = vld [vmem:[%s3] sm:$0xff]
      %v975 = vld [vmem:[%s3 + $0x8] sm:$0xff]
      %v976 = vld [vmem:[%s3 + $0x10] sm:$0xff]
      %v977 = vld [vmem:[%s3 + $0x18] sm:$0xff]
      %v978 = vld [vmem:[%s3 + $0x20] sm:$0xff]
      %v979 = vld [vmem:[%s3 + $0x28] sm:$0xff]
      %v980 = vld [vmem:[%s3 + $0x30] sm:$0xff]
      %v981 = vld [vmem:[%s3 + $0x38] sm:$0xff]
      %v982 = vld [vmem:[%s3 + $0x40] sm:$0xff]
      %v983 = vld [vmem:[%s3 + $0x48] sm:$0xff]
      %v984 = vld [vmem:[%s3 + $0x50] sm:$0xff]
      %v985 = vld [vmem:[%s3 + $0x58] sm:$0xff]
      %v986 = vld [vmem:[%s3 + $0x60] sm:$0xff]
      %v987 = vld [vmem:[%s3 + $0x68] sm:$0xff]
      %v988 = vld [vmem:[%s3 + $0x70] sm:$0xff]
      %v989 = vld [vmem:[%s3 + $0x78] sm:$0xff]
      %v990 = vld [vmem:[%s4] sm:$0x1]
      %v992 = vperm.slane %v990, 0
      %994 = vmatpush.msra.mxu0 %v989
      %995 = vmatpush.msra.mxu0 %v988
      %996 = vmatpush.msra.mxu0 %v987
      %997 = vmatpush.msra.mxu0 %v986
      %998 = vmatpush.msra.mxu0 %v985
      %999 = vmatpush.msra.mxu0 %v984
      %1000 = vmatpush.msra.mxu0 %v983
      %1001 = vmatpush.msra.mxu0 %v982
      %1002 = vmatpush.msra.mxu0 %v981
      %1003 = vmatpush.msra.mxu0 %v980
      %1004 = vmatpush.msra.mxu0 %v979
      %1005 = vmatpush.msra.mxu0 %v978
      %1006 = vmatpush.msra.mxu0 %v977
      %1007 = vmatpush.msra.mxu0 %v976
      %1008 = vmatpush.msra.mxu0 %v975
      %1009 = vmatpush.msra.mxu0 %v974
      %1010 = vmatmul.f32.gmra.mxu0 %v966
      %v1011 = vpop.f32.mrf.mxu0
      %v1012 = vadd.f32 %v992, %v1011
      %1013 = vmatmul.f32.gmra.mxu0 %v967
      %v1014 = vpop.f32.mrf.mxu0
      %v1015 = vadd.f32 %v992, %v1014
      %1016 = vmatmul.f32.gmra.mxu0 %v968
      %v1017 = vpop.f32.mrf.mxu0
      %v1018 = vadd.f32 %v992, %v1017
      %1019 = vmatmul.f32.gmra.mxu0 %v969
      %v1020 = vpop.f32.mrf.mxu0
      %v1021 = vadd.f32 %v992, %v1020
      %1022 = vmatmul.f32.gmra.mxu0 %v970
      %v1023 = vpop.f32.mrf.mxu0
      %v1024 = vadd.f32 %v992, %v1023
      %1025 = vmatmul.f32.gmra.mxu0 %v971
      %v1026 = vpop.f32.mrf.mxu0
      %v1027 = vadd.f32 %v992, %v1026
      %1028 = vmatmul.f32.gmra.mxu0 %v972
      %v1029 = vpop.f32.mrf.mxu0
      %v1030 = vadd.f32 %v992, %v1029
      %1031 = vmatmul.f32.gmra.mxu0 %v973
      %v1032 = vpop.f32.mrf.mxu0
      %v1033 = vadd.f32 %v992, %v1032
      %1034 = vdwg.mxu0
      %v1035 = vmax.f32 %v1012, 0.0
      %v1036 = vmax.f32 %v1015, 0.0
      %v1037 = vmax.f32 %v1018, 0.0
      %v1038 = vmax.f32 %v1021, 0.0
      %v1039 = vmax.f32 %v1024, 0.0
      %v1040 = vmax.f32 %v1027, 0.0
      %v1041 = vmax.f32 %v1030, 0.0
      %v1042 = vmax.f32 %v1033, 0.0
      %s1043 = scalar_lea.vmem [#allocation3], 16
      %1044 = vst.msk [vmem:[%s1043 + $0x1] sm:$0xff] %vm515, %v1035
      %1045 = vst.msk [vmem:[%s1043 + $0x11] sm:$0xff] %vm515, %v1036
      %1046 = vst.msk [vmem:[%s1043 + $0x21] sm:$0xff] %vm515, %v1037
      %1047 = vst.msk [vmem:[%s1043 + $0x31] sm:$0xff] %vm515, %v1038
      %1048 = vst.msk [vmem:[%s1043 + $0x41] sm:$0xff] %vm515, %v1039
      %1049 = vst.msk [vmem:[%s1043 + $0x51] sm:$0xff] %vm515, %v1040
      %1050 = vst.msk [vmem:[%s1043 + $0x61] sm:$0xff] %vm515, %v1041
      %1051 = vst.msk [vmem:[%s1043 + $0x71] sm:$0xff] %vm515, %v1042
      %v1052 = vsel %vm515, %v1035, 0.0
      %v1053 = vsel %vm515, %v1036, 0.0
      %v1054 = vadd.f32 %v1052, %v1053
      %v1055 = vsel %vm515, %v1037, 0.0
      %v1056 = vadd.f32 %v1054, %v1055
      %v1057 = vsel %vm515, %v1038, 0.0
      %v1058 = vadd.f32 %v1056, %v1057
      %v1059 = vsel %vm515, %v1039, 0.0
      %v1060 = vadd.f32 %v1058, %v1059
      %v1061 = vsel %vm515, %v1040, 0.0
      %v1062 = vadd.f32 %v1060, %v1061
      %v1063 = vsel %vm515, %v1041, 0.0
      %v1064 = vadd.f32 %v1062, %v1063
      %v1065 = vsel %vm515, %v1042, 0.0
      %v1066 = vadd.f32 %v1064, %v1065
      %v1067 = vrot.slane %v1066, 4
      %v1068 = vadd.f32 %v1066, %v1067
      %v1069 = vrot.slane %v1068, 2
      %v1070 = vadd.f32 %v1068, %v1069
      %v1071 = vrot.slane %v1070, 1
      %v1072 = vadd.f32 %v1070, %v1071
      %v1073 = vmul.f32 %v1072, 0.015625
      %v1074 = vld [vmem:[#allocation3] sm:$0xff]
      %v1075 = vld [vmem:[#allocation3 + $0x10] sm:$0xff]
      %v1076 = vld [vmem:[#allocation3 + $0x20] sm:$0xff]
      %v1077 = vld [vmem:[#allocation3 + $0x30] sm:$0xff]
      %v1078 = vld [vmem:[#allocation3 + $0x40] sm:$0xff]
      %v1079 = vld [vmem:[#allocation3 + $0x50] sm:$0xff]
      %v1080 = vld [vmem:[#allocation3 + $0x60] sm:$0xff]
      %v1081 = vld [vmem:[#allocation3 + $0x70] sm:$0xff]
      %v1082 = vld [vmem:[#allocation3 + $0x1] sm:$0xff]
      %v1083 = vld [vmem:[#allocation3 + $0x11] sm:$0xff]
      %v1084 = vld [vmem:[#allocation3 + $0x21] sm:$0xff]
      %v1085 = vld [vmem:[#allocation3 + $0x31] sm:$0xff]
      %v1086 = vld [vmem:[#allocation3 + $0x41] sm:$0xff]
      %v1087 = vld [vmem:[#allocation3 + $0x51] sm:$0xff]
      %v1088 = vld [vmem:[#allocation3 + $0x61] sm:$0xff]
      %v1089 = vld [vmem:[#allocation3 + $0x71] sm:$0xff]
      %v1090 = vld [vmem:[#allocation3 + $0x2] sm:$0xff]
      %v1091 = vld [vmem:[#allocation3 + $0x12] sm:$0xff]
      %v1092 = vld [vmem:[#allocation3 + $0x22] sm:$0xff]
      %v1093 = vld [vmem:[#allocation3 + $0x32] sm:$0xff]
      %v1094 = vld [vmem:[#allocation3 + $0x42] sm:$0xff]
      %v1095 = vld [vmem:[#allocation3 + $0x52] sm:$0xff]
      %v1096 = vld [vmem:[#allocation3 + $0x62] sm:$0xff]
      %v1097 = vld [vmem:[#allocation3 + $0x72] sm:$0xff]
      %v1098 = vld [vmem:[%s1043] sm:$0xff]
      %v1099 = vld [vmem:[%s1043 + $0x10] sm:$0xff]
      %v1100 = vld [vmem:[%s1043 + $0x20] sm:$0xff]
      %v1101 = vld [vmem:[%s1043 + $0x30] sm:$0xff]
      %v1102 = vld [vmem:[%s1043 + $0x40] sm:$0xff]
      %v1103 = vld [vmem:[%s1043 + $0x50] sm:$0xff]
      %v1104 = vld [vmem:[%s1043 + $0x60] sm:$0xff]
      %v1105 = vld [vmem:[%s1043 + $0x70] sm:$0xff]
      %v1106 = vld [vmem:[%s1043 + $0x1] sm:$0xff]
      %v1107 = vld [vmem:[%s1043 + $0x11] sm:$0xff]
      %v1108 = vld [vmem:[%s1043 + $0x21] sm:$0xff]
      %v1109 = vld [vmem:[%s1043 + $0x31] sm:$0xff]
      %v1110 = vld [vmem:[%s1043 + $0x41] sm:$0xff]
      %v1111 = vld [vmem:[%s1043 + $0x51] sm:$0xff]
      %v1112 = vld [vmem:[%s1043 + $0x61] sm:$0xff]
      %v1113 = vld [vmem:[%s1043 + $0x71] sm:$0xff]
      %v1114 = vld [vmem:[%s1043 + $0x2] sm:$0xff]
      %v1115 = vld [vmem:[%s1043 + $0x12] sm:$0xff]
      %v1116 = vld [vmem:[%s1043 + $0x22] sm:$0xff]
      %v1117 = vld [vmem:[%s1043 + $0x32] sm:$0xff]
      %v1118 = vld [vmem:[%s1043 + $0x42] sm:$0xff]
      %v1119 = vld [vmem:[%s1043 + $0x52] sm:$0xff]
      %v1120 = vld [vmem:[%s1043 + $0x62] sm:$0xff]
      %v1121 = vld [vmem:[%s1043 + $0x72] sm:$0xff]
      %s1122 = scalar_lea.vmem [#allocation3], 32
      %v1123 = vld [vmem:[%s1122] sm:$0xff]
      %v1124 = vld [vmem:[%s1122 + $0x10] sm:$0xff]
      %v1125 = vld [vmem:[%s1122 + $0x20] sm:$0xff]
      %v1126 = vld [vmem:[%s1122 + $0x30] sm:$0xff]
      %v1127 = vld [vmem:[%s1122 + $0x40] sm:$0xff]
      %v1128 = vld [vmem:[%s1122 + $0x50] sm:$0xff]
      %v1129 = vld [vmem:[%s1122 + $0x60] sm:$0xff]
      %v1130 = vld [vmem:[%s1122 + $0x70] sm:$0xff]
      %v1131 = vld [vmem:[%s1122 + $0x1] sm:$0xff]
      %v1132 = vld [vmem:[%s1122 + $0x11] sm:$0xff]
      %v1133 = vld [vmem:[%s1122 + $0x21] sm:$0xff]
      %v1134 = vld [vmem:[%s1122 + $0x31] sm:$0xff]
      %v1135 = vld [vmem:[%s1122 + $0x41] sm:$0xff]
      %v1136 = vld [vmem:[%s1122 + $0x51] sm:$0xff]
      %v1137 = vld [vmem:[%s1122 + $0x61] sm:$0xff]
      %v1138 = vld [vmem:[%s1122 + $0x71] sm:$0xff]
      %v1139 = vld [vmem:[%s1122 + $0x2] sm:$0xff]
      %v1140 = vld [vmem:[%s1122 + $0x12] sm:$0xff]
      %v1141 = vld [vmem:[%s1122 + $0x22] sm:$0xff]
      %v1142 = vld [vmem:[%s1122 + $0x32] sm:$0xff]
      %v1143 = vld [vmem:[%s1122 + $0x42] sm:$0xff]
      %v1144 = vld [vmem:[%s1122 + $0x52] sm:$0xff]
      %v1145 = vld [vmem:[%s1122 + $0x62] sm:$0xff]
      %v1146 = vld [vmem:[%s1122 + $0x72] sm:$0xff]
      %1155 = vrot.lane.b32.xlu0 %v1082, 16
      %v1156 = vpop.permute.xlu0 %1155
      %1157 = vrot.lane.b32.xlu0 %v1083, 16
      %v1158 = vpop.permute.xlu0 %1157
      %1159 = vrot.lane.b32.xlu0 %v1084, 16
      %v1160 = vpop.permute.xlu0 %1159
      %1161 = vrot.lane.b32.xlu0 %v1085, 16
      %v1162 = vpop.permute.xlu0 %1161
      %1163 = vrot.lane.b32.xlu0 %v1086, 16
      %v1164 = vpop.permute.xlu0 %1163
      %1165 = vrot.lane.b32.xlu0 %v1087, 16
      %v1166 = vpop.permute.xlu0 %1165
      %1167 = vrot.lane.b32.xlu0 %v1088, 16
      %v1168 = vpop.permute.xlu0 %1167
      %1169 = vrot.lane.b32.xlu0 %v1089, 16
      %v1170 = vpop.permute.xlu0 %1169
      %1187 = vrot.lane.b32.xlu0 %v1090, 32
      %v1188 = vpop.permute.xlu0 %1187
      %1189 = vrot.lane.b32.xlu0 %v1091, 32
      %v1190 = vpop.permute.xlu0 %1189
      %1191 = vrot.lane.b32.xlu0 %v1092, 32
      %v1192 = vpop.permute.xlu0 %1191
      %1193 = vrot.lane.b32.xlu0 %v1093, 32
      %v1194 = vpop.permute.xlu0 %1193
      %1195 = vrot.lane.b32.xlu0 %v1094, 32
      %v1196 = vpop.permute.xlu0 %1195
      %1197 = vrot.lane.b32.xlu0 %v1095, 32
      %v1198 = vpop.permute.xlu0 %1197
      %1199 = vrot.lane.b32.xlu0 %v1096, 32
      %v1200 = vpop.permute.xlu0 %1199
      %1201 = vrot.lane.b32.xlu0 %v1097, 32
      %v1202 = vpop.permute.xlu0 %1201
      %1219 = vrot.lane.b32.xlu0 %v1098, 48
      %v1220 = vpop.permute.xlu0 %1219
      %1221 = vrot.lane.b32.xlu0 %v1099, 48
      %v1222 = vpop.permute.xlu0 %1221
      %1223 = vrot.lane.b32.xlu0 %v1100, 48
      %v1224 = vpop.permute.xlu0 %1223
      %1225 = vrot.lane.b32.xlu0 %v1101, 48
      %v1226 = vpop.permute.xlu0 %1225
      %1227 = vrot.lane.b32.xlu0 %v1102, 48
      %v1228 = vpop.permute.xlu0 %1227
      %1229 = vrot.lane.b32.xlu0 %v1103, 48
      %v1230 = vpop.permute.xlu0 %1229
      %1231 = vrot.lane.b32.xlu0 %v1104, 48
      %v1232 = vpop.permute.xlu0 %1231
      %1233 = vrot.lane.b32.xlu0 %v1105, 48
      %v1234 = vpop.permute.xlu0 %1233
      %1251 = vrot.lane.b32.xlu0 %v1106, 64
      %v1252 = vpop.permute.xlu0 %1251
      %1253 = vrot.lane.b32.xlu0 %v1107, 64
      %v1254 = vpop.permute.xlu0 %1253
      %1255 = vrot.lane.b32.xlu0 %v1108, 64
      %v1256 = vpop.permute.xlu0 %1255
      %1257 = vrot.lane.b32.xlu0 %v1109, 64
      %v1258 = vpop.permute.xlu0 %1257
      %1259 = vrot.lane.b32.xlu0 %v1110, 64
      %v1260 = vpop.permute.xlu0 %1259
      %1261 = vrot.lane.b32.xlu0 %v1111, 64
      %v1262 = vpop.permute.xlu0 %1261
      %1263 = vrot.lane.b32.xlu0 %v1112, 64
      %v1264 = vpop.permute.xlu0 %1263
      %1265 = vrot.lane.b32.xlu0 %v1113, 64
      %v1266 = vpop.permute.xlu0 %1265
      %1283 = vrot.lane.b32.xlu0 %v1114, 80
      %v1284 = vpop.permute.xlu0 %1283
      %1285 = vrot.lane.b32.xlu0 %v1115, 80
      %v1286 = vpop.permute.xlu0 %1285
      %1287 = vrot.lane.b32.xlu0 %v1116, 80
      %v1288 = vpop.permute.xlu0 %1287
      %1289 = vrot.lane.b32.xlu0 %v1117, 80
      %v1290 = vpop.permute.xlu0 %1289
      %1291 = vrot.lane.b32.xlu0 %v1118, 80
      %v1292 = vpop.permute.xlu0 %1291
      %1293 = vrot.lane.b32.xlu0 %v1119, 80
      %v1294 = vpop.permute.xlu0 %1293
      %1295 = vrot.lane.b32.xlu0 %v1120, 80
      %v1296 = vpop.permute.xlu0 %1295
      %1297 = vrot.lane.b32.xlu0 %v1121, 80
      %v1298 = vpop.permute.xlu0 %1297
      %1315 = vrot.lane.b32.xlu0 %v1123, 96
      %v1316 = vpop.permute.xlu0 %1315
      %1317 = vrot.lane.b32.xlu0 %v1124, 96
      %v1318 = vpop.permute.xlu0 %1317
      %1319 = vrot.lane.b32.xlu0 %v1125, 96
      %v1320 = vpop.permute.xlu0 %1319
      %1321 = vrot.lane.b32.xlu0 %v1126, 96
      %v1322 = vpop.permute.xlu0 %1321
      %1323 = vrot.lane.b32.xlu0 %v1127, 96
      %v1324 = vpop.permute.xlu0 %1323
      %1325 = vrot.lane.b32.xlu0 %v1128, 96
      %v1326 = vpop.permute.xlu0 %1325
      %1327 = vrot.lane.b32.xlu0 %v1129, 96
      %v1328 = vpop.permute.xlu0 %1327
      %1329 = vrot.lane.b32.xlu0 %v1130, 96
      %v1330 = vpop.permute.xlu0 %1329
      %1347 = vrot.lane.b32.xlu0 %v1131, 112
      %v1348 = vpop.permute.xlu0 %1347
      %1349 = vrot.lane.b32.xlu0 %v1132, 112
      %v1350 = vpop.permute.xlu0 %1349
      %1351 = vrot.lane.b32.xlu0 %v1133, 112
      %v1352 = vpop.permute.xlu0 %1351
      %1353 = vrot.lane.b32.xlu0 %v1134, 112
      %v1354 = vpop.permute.xlu0 %1353
      %1355 = vrot.lane.b32.xlu0 %v1135, 112
      %v1356 = vpop.permute.xlu0 %1355
      %1357 = vrot.lane.b32.xlu0 %v1136, 112
      %v1358 = vpop.permute.xlu0 %1357
      %1359 = vrot.lane.b32.xlu0 %v1137, 112
      %v1360 = vpop.permute.xlu0 %1359
      %1361 = vrot.lane.b32.xlu0 %v1138, 112
      %v1362 = vpop.permute.xlu0 %1361
      %v1371 = vsel %vm515, %v1074, %v1156
      %v1372 = vsel %vm515, %v1075, %v1158
      %v1373 = vsel %vm515, %v1076, %v1160
      %v1374 = vsel %vm515, %v1077, %v1162
      %v1375 = vsel %vm515, %v1078, %v1164
      %v1376 = vsel %vm515, %v1079, %v1166
      %v1377 = vsel %vm515, %v1080, %v1168
      %v1378 = vsel %vm515, %v1081, %v1170
      %v1379 = vsel %vm495, %v1371, %v1188
      %v1380 = vsel %vm495, %v1372, %v1190
      %v1381 = vsel %vm495, %v1373, %v1192
      %v1382 = vsel %vm495, %v1374, %v1194
      %v1383 = vsel %vm495, %v1375, %v1196
      %v1384 = vsel %vm495, %v1376, %v1198
      %v1385 = vsel %vm495, %v1377, %v1200
      %v1386 = vsel %vm495, %v1378, %v1202
      %v1387 = vsel %vm682, %v1379, %v1220
      %v1388 = vsel %vm682, %v1380, %v1222
      %v1389 = vsel %vm682, %v1381, %v1224
      %v1390 = vsel %vm682, %v1382, %v1226
      %v1391 = vsel %vm682, %v1383, %v1228
      %v1392 = vsel %vm682, %v1384, %v1230
      %v1393 = vsel %vm682, %v1385, %v1232
      %v1394 = vsel %vm682, %v1386, %v1234
      %v1395 = vsel %vm703, %v1387, %v1252
      %v1396 = vsel %vm703, %v1388, %v1254
      %v1397 = vsel %vm703, %v1389, %v1256
      %v1398 = vsel %vm703, %v1390, %v1258
      %v1399 = vsel %vm703, %v1391, %v1260
      %v1400 = vsel %vm703, %v1392, %v1262
      %v1401 = vsel %vm703, %v1393, %v1264
      %v1402 = vsel %vm703, %v1394, %v1266
      %vm1403 = vcmask 654336
      %v1404 = vsel %vm1403, %v1395, %v1284
      %v1405 = vsel %vm1403, %v1396, %v1286
      %v1406 = vsel %vm1403, %v1397, %v1288
      %v1407 = vsel %vm1403, %v1398, %v1290
      %v1408 = vsel %vm1403, %v1399, %v1292
      %v1409 = vsel %vm1403, %v1400, %v1294
      %v1410 = vsel %vm1403, %v1401, %v1296
      %v1411 = vsel %vm1403, %v1402, %v1298
      %v1412 = vsel %vm965, %v1404, %v1316
      %v1413 = vsel %vm965, %v1405, %v1318
      %v1414 = vsel %vm965, %v1406, %v1320
      %v1415 = vsel %vm965, %v1407, %v1322
      %v1416 = vsel %vm965, %v1408, %v1324
      %v1417 = vsel %vm965, %v1409, %v1326
      %v1418 = vsel %vm965, %v1410, %v1328
      %v1419 = vsel %vm965, %v1411, %v1330
      %vm1420 = vcmask 916480
      %v1421 = vsel %vm1420, %v1412, %v1348
      %v1422 = vsel %vm1420, %v1413, %v1350
      %v1423 = vsel %vm1420, %v1414, %v1352
      %v1424 = vsel %vm1420, %v1415, %v1354
      %v1425 = vsel %vm1420, %v1416, %v1356
      %v1426 = vsel %vm1420, %v1417, %v1358
      %v1427 = vsel %vm1420, %v1418, %v1360
      %v1428 = vsel %vm1420, %v1419, %v1362
      %v1429 = vld [vmem:[%s5] sm:$0xff]
      %v1430 = vld [vmem:[%s5 + $0x8] sm:$0xff]
      %v1431 = vld [vmem:[%s5 + $0x10] sm:$0xff]
      %v1432 = vld [vmem:[%s5 + $0x18] sm:$0xff]
      %v1433 = vld [vmem:[%s5 + $0x20] sm:$0xff]
      %v1434 = vld [vmem:[%s5 + $0x28] sm:$0xff]
      %v1435 = vld [vmem:[%s5 + $0x30] sm:$0xff]
      %v1436 = vld [vmem:[%s5 + $0x38] sm:$0xff]
      %v1437 = vld [vmem:[%s5 + $0x40] sm:$0xff]
      %v1438 = vld [vmem:[%s5 + $0x48] sm:$0xff]
      %v1439 = vld [vmem:[%s5 + $0x50] sm:$0xff]
      %v1440 = vld [vmem:[%s5 + $0x58] sm:$0xff]
      %v1441 = vld [vmem:[%s5 + $0x60] sm:$0xff]
      %v1442 = vld [vmem:[%s5 + $0x68] sm:$0xff]
      %v1443 = vld [vmem:[%s5 + $0x70] sm:$0xff]
      %v1444 = vld [vmem:[%s5 + $0x78] sm:$0xff]
      %v1445 = vld [vmem:[%s5 + $0x80] sm:$0xff]
      %v1446 = vld [vmem:[%s5 + $0x88] sm:$0xff]
      %v1447 = vld [vmem:[%s6] sm:$0x1]
      %v1449 = vperm.slane %v1447, 0
      %v1452 = vsel %vm515, %v1139, 0
      %v1455 = vsel %vm515, %v1140, 0
      %v1458 = vsel %vm515, %v1141, 0
      %v1461 = vsel %vm515, %v1142, 0
      %v1464 = vsel %vm515, %v1143, 0
      %v1467 = vsel %vm515, %v1144, 0
      %v1470 = vsel %vm515, %v1145, 0
      %v1473 = vsel %vm515, %v1146, 0
      %1475 = vmatpush.msra.mxu0 %v1444
      %1476 = vmatpush.msra.mxu0 %v1443
      %1477 = vmatpush.msra.mxu0 %v1442
      %1478 = vmatpush.msra.mxu0 %v1441
      %1479 = vmatpush.msra.mxu0 %v1440
      %1480 = vmatpush.msra.mxu0 %v1439
      %1481 = vmatpush.msra.mxu0 %v1438
      %1482 = vmatpush.msra.mxu0 %v1437
      %1483 = vmatpush.msra.mxu0 %v1436
      %1484 = vmatpush.msra.mxu0 %v1435
      %1485 = vmatpush.msra.mxu0 %v1434
      %1486 = vmatpush.msra.mxu0 %v1433
      %1487 = vmatpush.msra.mxu0 %v1432
      %1488 = vmatpush.msra.mxu0 %v1431
      %1489 = vmatpush.msra.mxu0 %v1430
      %1490 = vmatpush.msra.mxu0 %v1429
      %1491 = vmatmul.f32.gmra.mxu0 %v1421
      %v1492 = vpop.f32.mrf.mxu0
      %v1493 = vadd.f32 %v1449, %v1492
      %1494 = vmatmul.f32.gmra.mxu0 %v1422
      %v1495 = vpop.f32.mrf.mxu0
      %v1496 = vadd.f32 %v1449, %v1495
      %1497 = vmatmul.f32.gmra.mxu0 %v1423
      %v1498 = vpop.f32.mrf.mxu0
      %v1499 = vadd.f32 %v1449, %v1498
      %1500 = vmatmul.f32.gmra.mxu0 %v1424
      %v1501 = vpop.f32.mrf.mxu0
      %v1502 = vadd.f32 %v1449, %v1501
      %1503 = vmatmul.f32.gmra.mxu0 %v1425
      %v1504 = vpop.f32.mrf.mxu0
      %v1505 = vadd.f32 %v1449, %v1504
      %1506 = vmatmul.f32.gmra.mxu0 %v1426
      %v1507 = vpop.f32.mrf.mxu0
      %v1508 = vadd.f32 %v1449, %v1507
      %1509 = vmatmul.f32.gmra.mxu0 %v1427
      %v1510 = vpop.f32.mrf.mxu0
      %v1511 = vadd.f32 %v1449, %v1510
      %1512 = vmatmul.f32.gmra.mxu0 %v1428
      %v1513 = vpop.f32.mrf.mxu0
      %v1514 = vadd.f32 %v1449, %v1513
      %1515 = vdwg.mxu0
      %1516 = vmatpush.msra.mxu0 0.0
      %1517 = vmatpush.msra.mxu0 0.0
      %1518 = vmatpush.msra.mxu0 0.0
      %1519 = vmatpush.msra.mxu0 0.0
      %1520 = vmatpush.msra.mxu0 0.0
      %1521 = vmatpush.msra.mxu0 0.0
      %1522 = vmatpush.msra.mxu0 0.0
      %1523 = vmatpush.msra.mxu0 0.0
      %1524 = vmatpush.msra.mxu0 0.0
      %1525 = vmatpush.msra.mxu0 0.0
      %1526 = vmatpush.msra.mxu0 0.0
      %1527 = vmatpush.msra.mxu0 0.0
      %1528 = vmatpush.msra.mxu0 0.0
      %1529 = vmatpush.msra.mxu0 0.0
      %1530 = vmatpush.msra.mxu0 %v1446
      %1531 = vmatpush.msra.mxu0 %v1445
      %1532 = vmatmul.f32.gmra.mxu0 %v1452
      %v1533 = vpop.f32.mrf.mxu0
      %v1534 = vadd.f32 %v1493, %v1533
      %1535 = vmatmul.f32.gmra.mxu0 %v1455
      %v1536 = vpop.f32.mrf.mxu0
      %v1537 = vadd.f32 %v1496, %v1536
      %1538 = vmatmul.f32.gmra.mxu0 %v1458
      %v1539 = vpop.f32.mrf.mxu0
      %v1540 = vadd.f32 %v1499, %v1539
      %1541 = vmatmul.f32.gmra.mxu0 %v1461
      %v1542 = vpop.f32.mrf.mxu0
      %v1543 = vadd.f32 %v1502, %v1542
      %1544 = vmatmul.f32.gmra.mxu0 %v1464
      %v1545 = vpop.f32.mrf.mxu0
      %v1546 = vadd.f32 %v1505, %v1545
      %1547 = vmatmul.f32.gmra.mxu0 %v1467
      %v1548 = vpop.f32.mrf.mxu0
      %v1549 = vadd.f32 %v1508, %v1548
      %1550 = vmatmul.f32.gmra.mxu0 %v1470
      %v1551 = vpop.f32.mrf.mxu0
      %v1552 = vadd.f32 %v1511, %v1551
      %1553 = vmatmul.f32.gmra.mxu0 %v1473
      %v1554 = vpop.f32.mrf.mxu0
      %v1555 = vadd.f32 %v1514, %v1554
      %1556 = vdwg.mxu0
      %v1557 = vmax.f32 %v1534, 0.0
      %v1558 = vmax.f32 %v1537, 0.0
      %v1559 = vmax.f32 %v1540, 0.0
      %v1560 = vmax.f32 %v1543, 0.0
      %v1561 = vmax.f32 %v1546, 0.0
      %v1562 = vmax.f32 %v1549, 0.0
      %v1563 = vmax.f32 %v1552, 0.0
      %v1564 = vmax.f32 %v1555, 0.0
      %v1565 = vld [vmem:[%s7] sm:$0xff]
      %v1566 = vld [vmem:[%s7 + $0x8] sm:$0xff]
      %v1567 = vld [vmem:[%s7 + $0x10] sm:$0xff]
      %v1568 = vld [vmem:[%s7 + $0x18] sm:$0xff]
      %v1569 = vld [vmem:[%s8] sm:$0x1]
      %v1571 = vperm.slane %v1569, 0
      %v1574 = vsel %vm495, %v1557, 0
      %v1577 = vsel %vm495, %v1558, 0
      %v1580 = vsel %vm495, %v1559, 0
      %v1583 = vsel %vm495, %v1560, 0
      %v1586 = vsel %vm495, %v1561, 0
      %v1589 = vsel %vm495, %v1562, 0
      %v1592 = vsel %vm495, %v1563, 0
      %v1595 = vsel %vm495, %v1564, 0
      %1597 = vmatpush.msra.mxu0 0.0
      %1598 = vmatpush.msra.mxu0 0.0
      %1599 = vmatpush.msra.mxu0 0.0
      %1600 = vmatpush.msra.mxu0 0.0
      %1601 = vmatpush.msra.mxu0 0.0
      %1602 = vmatpush.msra.mxu0 0.0
      %1603 = vmatpush.msra.mxu0 0.0
      %1604 = vmatpush.msra.mxu0 0.0
      %1605 = vmatpush.msra.mxu0 0.0
      %1606 = vmatpush.msra.mxu0 0.0
      %1607 = vmatpush.msra.mxu0 0.0
      %1608 = vmatpush.msra.mxu0 0.0
      %1609 = vmatpush.msra.mxu0 %v1568
      %1610 = vmatpush.msra.mxu0 %v1567
      %1611 = vmatpush.msra.mxu0 %v1566
      %1612 = vmatpush.msra.mxu0 %v1565
      %1613 = vmatmul.f32.gmra.mxu0 %v1574
      %v1614 = vpop.f32.mrf.mxu0
      %v1615 = vadd.f32 %v1571, %v1614
      %1616 = vmatmul.f32.gmra.mxu0 %v1577
      %v1617 = vpop.f32.mrf.mxu0
      %v1618 = vadd.f32 %v1571, %v1617
      %1619 = vmatmul.f32.gmra.mxu0 %v1580
      %v1620 = vpop.f32.mrf.mxu0
      %v1621 = vadd.f32 %v1571, %v1620
      %1622 = vmatmul.f32.gmra.mxu0 %v1583
      %v1623 = vpop.f32.mrf.mxu0
      %v1624 = vadd.f32 %v1571, %v1623
      %1625 = vmatmul.f32.gmra.mxu0 %v1586
      %v1626 = vpop.f32.mrf.mxu0
      %v1627 = vadd.f32 %v1571, %v1626
      %1628 = vmatmul.f32.gmra.mxu0 %v1589
      %v1629 = vpop.f32.mrf.mxu0
      %v1630 = vadd.f32 %v1571, %v1629
      %1631 = vmatmul.f32.gmra.mxu0 %v1592
      %v1632 = vpop.f32.mrf.mxu0
      %v1633 = vadd.f32 %v1571, %v1632
      %1634 = vmatmul.f32.gmra.mxu0 %v1595
      %v1635 = vpop.f32.mrf.mxu0
      %v1636 = vadd.f32 %v1571, %v1635
      %1637 = vdwg.mxu0
      %1639 = vrot.lane.b32.xlu0 %v1073, 8
      %v1640 = vpop.permute.xlu0 %1639
      %vm1642 = vcmask 64512
      %v1643 = vsel %vm1642, %v820, %v1640
      %v1644 = vld [vmem:[%s9] sm:$0xff]
      %v1645 = vld [vmem:[%s9 + $0x8] sm:$0xff]
      %v1646 = vld [vmem:[%s9 + $0x10] sm:$0xff]
      %vm1647 = vcmask 195584
      %v1649 = vsel %vm1647, %v1643, 0
      %1651 = vmatpush.msra.mxu0 0.0
      %1652 = vmatpush.msra.mxu0 0.0
      %1653 = vmatpush.msra.mxu0 0.0
      %1654 = vmatpush.msra.mxu0 0.0
      %1655 = vmatpush.msra.mxu0 0.0
      %1656 = vmatpush.msra.mxu0 0.0
      %1657 = vmatpush.msra.mxu0 0.0
      %1658 = vmatpush.msra.mxu0 0.0
      %1659 = vmatpush.msra.mxu0 0.0
      %1660 = vmatpush.msra.mxu0 0.0
      %1661 = vmatpush.msra.mxu0 0.0
      %1662 = vmatpush.msra.mxu0 0.0
      %1663 = vmatpush.msra.mxu0 0.0
      %1664 = vmatpush.msra.mxu0 %v1646
      %1665 = vmatpush.msra.mxu0 %v1645
      %1666 = vmatpush.msra.mxu0 %v1644
      %1667 = vmatmul.f32.gmra.mxu0 %v1649
      %v1668 = vpop.f32.mrf.mxu0
      %v1669 = vadd.f32 0.0, %v1668
      %1670 = vdwg.mxu0
      %v1671 = vmul.f32 %v1669, 0.20412415
      %vm1672 = vcmask 122880
      %v1673 = vsel %vm1672, %v1671, -inf
      %1674 = vmax.xlane.f32.xlu0 %v1673
      %v1675 = vpop.xlane.xlu0 %1674
      %v1676 = vsub.f32 %v1671, %v1675
      %v1677 = vmul.f32 %v1676, 1.442695
      %v1678 = vpow.pop %v1677
      %v1679 = vsel %vm1672, %v1678, 0.0
      %1680 = vadd.xlane.f32.xlu0 %v1679
      %v1681 = vpop.xlane.xlu0 %1680
      %v1682 = vrcp.pop %v1681
      %v1683 = vmul.f32 %v1678, %v1682
      %v1684 = vld [vmem:[%s10] sm:$0xff]
      %v1685 = vld [vmem:[%s10 + $0x8] sm:$0xff]
      %v1687 = vsel %vm515, %v1683, 0
      %1689 = vmatpush.msra.mxu0 0.0
      %1690 = vmatpush.msra.mxu0 0.0
      %1691 = vmatpush.msra.mxu0 0.0
      %1692 = vmatpush.msra.mxu0 0.0
      %1693 = vmatpush.msra.mxu0 0.0
      %1694 = vmatpush.msra.mxu0 0.0
      %1695 = vmatpush.msra.mxu0 0.0
      %1696 = vmatpush.msra.mxu0 0.0
      %1697 = vmatpush.msra.mxu0 0.0
      %1698 = vmatpush.msra.mxu0 0.0
      %1699 = vmatpush.msra.mxu0 0.0
      %1700 = vmatpush.msra.mxu0 0.0
      %1701 = vmatpush.msra.mxu0 0.0
      %1702 = vmatpush.msra.mxu0 0.0
      %1703 = vmatpush.msra.mxu0 %v1685
      %1704 = vmatpush.msra.mxu0 %v1684
      %1705 = vmatmul.f32.gmra.mxu0 %v1687
      %v1706 = vpop.f32.mrf.mxu0
      %v1707 = vadd.f32 0.0, %v1706
      %1708 = vdwg.mxu0
      %v1709 = vld [vmem:[%s11] sm:$0xff]
      %v1710 = vld [vmem:[%s11 + $0x8] sm:$0xff]
      %v1711 = vld [vmem:[%s11 + $0x10] sm:$0xff]
      %v1712 = vld [vmem:[%s12] sm:$0x1]
      %v1714 = vsel %vm1647, %v1707, 0
      %1716 = vmatpush.msra.mxu0 0.0
      %1717 = vmatpush.msra.mxu0 0.0
      %1718 = vmatpush.msra.mxu0 0.0
      %1719 = vmatpush.msra.mxu0 0.0
      %1720 = vmatpush.msra.mxu0 0.0
      %1721 = vmatpush.msra.mxu0 0.0
      %1722 = vmatpush.msra.mxu0 0.0
      %1723 = vmatpush.msra.mxu0 0.0
      %1724 = vmatpush.msra.mxu0 0.0
      %1725 = vmatpush.msra.mxu0 0.0
      %1726 = vmatpush.msra.mxu0 0.0
      %1727 = vmatpush.msra.mxu0 0.0
      %1728 = vmatpush.msra.mxu0 0.0
      %1729 = vmatpush.msra.mxu0 %v1711
      %1730 = vmatpush.msra.mxu0 %v1710
      %1731 = vmatpush.msra.mxu0 %v1709
      %1732 = vmatmul.f32.gmra.mxu0 %v1714
      %v1733 = vpop.f32.mrf.mxu0
      %v1734 = vadd.f32 %v1712, %v1733
      %1735 = vdwg.mxu0
      %v1736 = vmax.f32 %v1734, 0.0
      %v1737 = vperm.slane %v1736, 0
      %v1738 = vadd.f32 %v1615, %v1737
      %v1739 = vadd.f32 %v1618, %v1737
      %v1740 = vadd.f32 %v1621, %v1737
      %v1741 = vadd.f32 %v1624, %v1737
      %v1742 = vadd.f32 %v1627, %v1737
      %v1743 = vadd.f32 %v1630, %v1737
      %v1744 = vadd.f32 %v1633, %v1737
      %v1745 = vadd.f32 %v1636, %v1737
      %v1746 = vld [vmem:[%s13] sm:$0xff]
      %v1747 = vld [vmem:[%s13 + $0x8] sm:$0xff]
      %v1748 = vld [vmem:[%s13 + $0x10] sm:$0xff]
      %v1749 = vld [vmem:[%s13 + $0x18] sm:$0xff]
      %v1750 = vld [vmem:[%s14] sm:$0x1]
      %v1752 = vperm.slane %v1750, 0
      %v1755 = vsel %vm495, %v1738, 0
      %v1758 = vsel %vm495, %v1739, 0
      %v1761 = vsel %vm495, %v1740, 0
      %v1764 = vsel %vm495, %v1741, 0
      %v1767 = vsel %vm495, %v1742, 0
      %v1770 = vsel %vm495, %v1743, 0
      %v1773 = vsel %vm495, %v1744, 0
      %v1776 = vsel %vm495, %v1745, 0
      %1778 = vmatpush.msra.mxu0 0.0
      %1779 = vmatpush.msra.mxu0 0.0
      %1780 = vmatpush.msra.mxu0 0.0
      %1781 = vmatpush.msra.mxu0 0.0
      %1782 = vmatpush.msra.mxu0 0.0
      %1783 = vmatpush.msra.mxu0 0.0
      %1784 = vmatpush.msra.mxu0 0.0
      %1785 = vmatpush.msra.mxu0 0.0
      %1786 = vmatpush.msra.mxu0 0.0
      %1787 = vmatpush.msra.mxu0 0.0
      %1788 = vmatpush.msra.mxu0 0.0
      %1789 = vmatpush.msra.mxu0 0.0
      %1790 = vmatpush.msra.mxu0 %v1749
      %1791 = vmatpush.msra.mxu0 %v1748
      %1792 = vmatpush.msra.mxu0 %v1747
      %1793 = vmatpush.msra.mxu0 %v1746
      %1794 = vmatmul.f32.gmra.mxu0 %v1755
      %v1795 = vpop.f32.mrf.mxu0
      %v1796 = vadd.f32 %v1752, %v1795
      %1797 = vmatmul.f32.gmra.mxu0 %v1758
      %v1798 = vpop.f32.mrf.mxu0
      %v1799 = vadd.f32 %v1752, %v1798
      %1800 = vmatmul.f32.gmra.mxu0 %v1761
      %v1801 = vpop.f32.mrf.mxu0
      %v1802 = vadd.f32 %v1752, %v1801
      %1803 = vmatmul.f32.gmra.mxu0 %v1764
      %v1804 = vpop.f32.mrf.mxu0
      %v1805 = vadd.f32 %v1752, %v1804
      %1806 = vmatmul.f32.gmra.mxu0 %v1767
      %v1807 = vpop.f32.mrf.mxu0
      %v1808 = vadd.f32 %v1752, %v1807
      %1809 = vmatmul.f32.gmra.mxu0 %v1770
      %v1810 = vpop.f32.mrf.mxu0
      %v1811 = vadd.f32 %v1752, %v1810
      %1812 = vmatmul.f32.gmra.mxu0 %v1773
      %v1813 = vpop.f32.mrf.mxu0
      %v1814 = vadd.f32 %v1752, %v1813
      %1815 = vmatmul.f32.gmra.mxu0 %v1776
      %v1816 = vpop.f32.mrf.mxu0
      %v1817 = vadd.f32 %v1752, %v1816
      %1818 = vdwg.mxu0
      %vm1819 = vcmask 31744
      %1820 = vst.msk [vmem:[%s494] sm:$0xff] %vm1819, %v1796
      %1821 = vst.msk [vmem:[%s494 + $0x8] sm:$0xff] %vm1819, %v1799
      %1822 = vst.msk [vmem:[%s494 + $0x10] sm:$0xff] %vm1819, %v1802
      %1823 = vst.msk [vmem:[%s494 + $0x18] sm:$0xff] %vm1819, %v1805
      %1824 = vst.msk [vmem:[%s494 + $0x20] sm:$0xff] %vm1819, %v1808
      %1825 = vst.msk [vmem:[%s494 + $0x28] sm:$0xff] %vm1819, %v1811
      %1826 = vst.msk [vmem:[%s494 + $0x30] sm:$0xff] %vm1819, %v1814
      %1827 = vst.msk [vmem:[%s494 + $0x38] sm:$0xff] %vm1819, %v1817
      %p1828 = scmp.lt.s32.totalorder %s26, 1
      %s1829 = scalar_select %p1828, %s26, 1
      %s1830 = smul.addr %s1829, 8
      %s1831 = smul.addr %s1830, 8
      %s1832 = scalar_lea.vmem %s15, %s1831
      // Predicated region
      $region81: #{main_model_forward.1} parent=79 // pred_check
        %p1833 = pneg %p364
      $region82: #{main_model_forward.1} parent=79 // pred_check_branch
        %1835 = sbr.rel (%p1833) target = $region84
      $region83: #{main_model_forward.1} parent=79 // pred_region
        _
      $region84: #{main_model_forward.1} parent=79 // pred_fallthru
        _
    $region80: #{main_model_forward.1} parent=5 // pred_fallthru
      _
    %p1836 = scmp.le.s32.totalorder 2, %s21
    // Predicated region
    $region85: #{main_model_forward.1} parent=5 // pred_check
      %p1837 = pneg %p1836
    $region86: #{main_model_forward.1} parent=5 // pred_check_branch
      %1839 = sbr.rel (%p1837) target = $region88
    $region87: #{main_model_forward.1} parent=5 // pred_region
      %s1840 = ssub.s32 %s21, 2
      // Predicated region
      $region89: #{main_model_forward.1} parent=87 // pred_check
        %p1841 = pneg %p370
      $region90: #{main_model_forward.1} parent=87 // pred_check_branch
        %1843 = sbr.rel (%p1841) target = $region92
      $region91: #{main_model_forward.1} parent=87 // pred_region
        %p1844 = scmp.lt.s32.totalorder %s27, 1
        %s1845 = scalar_select %p1844, %s27, 1
        %s1846 = smul.addr %s1845, 8
        %s1847 = smul.addr %s1846, 8
        %s1848 = scalar_lea.vmem %s15, %s1847
      $region92: #{main_model_forward.1} parent=87 // pred_fallthru
        _
    $region88: #{main_model_forward.1} parent=5 // pred_fallthru
      _
  $region6: #{main_model_forward.1} parent=0 // loop_footer
    %s25 = sadd.s32 1, %s21
  $region7: #{main_model_forward.1} parent=0 // loop_footer_branch
    %20 = sbr.rel target = $region3
  $region8: #{main_model_forward.1} parent=0 // loop_exit
    _

</llo_original>
